<compile_context>
chip_gen: v7x
topology: tpu7x:2x2x1
jax: 0.10.0
libtpu: 0.0.40
codegen_flags: <defaults>
</compile_context>

<pallas_src>
from functools import partial

import numpy as np
import jax
import jax.numpy as jnp
from jax.experimental import pallas as pl
from jax.experimental.pallas import tpu as pltpu


def _round_up(n, m):
    return ((n + m - 1) // m) * m


# ----------------------------------------------------------------------------
# Kernel: feature projection (backbone stand-in, f32) + fused fc head whose
# bias/alpha/beta corrections AND the projection were pre-folded into PW/b'
# on the host, so the two MXU matmuls are independent.
# ----------------------------------------------------------------------------
def incnet_kernel(x_ref, projw_ref, pw_ref, fcb_ref, feat_ref, logit_ref):
    x = x_ref[...]                                        # (Bp, K) f32
    # ---- features: f32 operands, f32 accumulation (fidelity for BiC/NME) ----
    feat_ref[...] = jnp.dot(x, projw_ref[...],
                            preferred_element_type=jnp.float32)
    # ---- logits: x @ (proj_w @ fc_w*alpha) + (alpha*fc_b + beta), bf16 MXU ---
    logits = jnp.dot(x.astype(pw_ref.dtype), pw_ref[...],
                     preferred_element_type=jnp.float32)
    logit_ref[...] = logits + fcb_ref[...]


# ----------------------------------------------------------------------------
# One-time host-side parameter preparation (call once per task configuration,
# NOT per forward): fold the BiasLayer stack + fc bias into the fc weights,
# fold the fc weights through the backbone projection, and pad the class
# dimension to a multiple of 128 lanes.
#   alpha*(f@W + b) + beta == f @ (W*alpha) + (alpha*b + beta)
#   f = x @ P  =>  logits = x @ (P @ (W*alpha)) + (alpha*b + beta)
# ----------------------------------------------------------------------------
def prepare_incnet_params(proj_w, fc_w, fc_b, task_sizes, layer_alphas,
                          layer_betas, bias_correction=True, class_pad=128):
    proj_w_np = np.asarray(proj_w, np.float32)            # (K, D)
    fc_w_np = np.asarray(fc_w, np.float32)                 # (D, C)
    fc_b_np = np.asarray(fc_b, np.float32)                 # (C,)
    D = proj_w_np.shape[1]
    C = fc_w_np.shape[1]
    C_pad = _round_up(max(C, class_pad), class_pad)

    alpha = np.ones((C,), np.float32)
    beta = np.zeros((C,), np.float32)
    if bias_correction:
        off = 0
        for i, ts in enumerate(task_sizes):
            alpha[off:off + ts] = float(layer_alphas[i])
            beta[off:off + ts] = float(layer_betas[i])
            off += ts

    fc_w_fold = fc_w_np * alpha[None, :]                   # (D, C)
    fc_b_fold = alpha * fc_b_np + beta                     # (C,)

    # Fold the projection through the fc head: PW = P @ (W*alpha), shape (K, C).
    pw_fold = proj_w_np @ fc_w_fold

    pw_pad = np.zeros((proj_w_np.shape[0], C_pad), np.float32)
    pw_pad[:, :C] = pw_fold
    fc_b_pad = np.zeros((1, C_pad), np.float32)
    fc_b_pad[0, :C] = fc_b_fold

    # NOTE: on v5e/v6e pw_fold could further be int8-quantized (fp8 on v7x) to
    # halve the weight DMA; kept bf16 here to stay within test tolerances.
    return {
        "proj_w": jnp.asarray(proj_w_np, jnp.float32),     # (K, D) f32 backbone stand-in
        "pw_fold": jnp.asarray(pw_pad, jnp.bfloat16),      # (K, C_pad) folded head, bf16
        "fc_b": jnp.asarray(fc_b_pad, jnp.float32),        # (1, C_pad) folded bias
        "num_classes": C,
    }


# ----------------------------------------------------------------------------
# Fully fused forward: reshape/pad/cast + pallas_call + output slices are ONE
# jitted computation (num_classes is static).  Whole arrays fit comfortably in
# VMEM at these sizes (<3 MiB), so no grid is needed; full-array blocks are
# exempt from the (8,128) block-shape constraint and padding makes them
# lane/sublane-dense anyway.
# ----------------------------------------------------------------------------
@partial(jax.jit, static_argnums=(4,))
def _incnet_forward(x, proj_w, pw_fold, fc_b, num_classes):
    B = x.shape[0]
    x_flat = x.reshape(B, -1).astype(jnp.float32)
    K = x_flat.shape[1]
    D = proj_w.shape[1]
    Cp = pw_fold.shape[1]

    # Pad batch to a multiple of 16 (bf16 packs 16 rows per sublane group).
    Bp = _round_up(max(B, 16), 16)
    if Bp != B:
        x_flat = jnp.pad(x_flat, ((0, Bp - B), (0, 0)))

    flops = 2 * Bp * K * (D + Cp)
    bytes_accessed = (Bp * K * 4            # x
                      + K * D * 4           # proj_w (f32)
                      + K * Cp * 2          # pw_fold (bf16)
                      + Cp * 4              # fc_b
                      + Bp * D * 4          # features out
                      + Bp * Cp * 4)        # logits out

    feats, logits = pl.pallas_call(
        incnet_kernel,
        out_shape=(jax.ShapeDtypeStruct((Bp, D), jnp.float32),
                   jax.ShapeDtypeStruct((Bp, Cp), jnp.float32)),
        in_specs=[pl.BlockSpec(memory_space=pltpu.MemorySpace.VMEM)] * 4,
        out_specs=(pl.BlockSpec(memory_space=pltpu.MemorySpace.VMEM),
                   pl.BlockSpec(memory_space=pltpu.MemorySpace.VMEM)),
        cost_estimate=pl.CostEstimate(flops=flops, transcendentals=0,
                                      bytes_accessed=bytes_accessed),
    )(x_flat, proj_w, pw_fold, fc_b)

    # Slices are fused into the same jit (no extra dispatch / HBM round-trip).
    return feats[:B], logits[:B, :num_classes]


def incremental_net_with_bias_forward(x, params):
    """Returns dict with 'features' (B, D) and 'logits' (B, C), matching the
    IncrementalNetWithBias.forward output keys."""
    feats, logits = _incnet_forward(x, params["proj_w"], params["pw_fold"],
                                    params["fc_b"], params["num_classes"])
    return {"features": feats, "logits": logits}


if __name__ == "__main__":
    key = jax.random.PRNGKey(0)
    k_x, k_p, k_w, k_b = jax.random.split(key, 4)

    # Small shapes consistent with the module's forward:
    #   images (NCHW), feature_dim=512 (CLIP ViT-B-16 out_dim), 2 incremental tasks.
    B, Cin, H, W = 2, 3, 16, 16
    feature_dim = 512
    task_sizes = [10, 10]             # two update_fc() calls
    num_classes = sum(task_sizes)

    x = jax.random.normal(k_x, (B, Cin, H, W), dtype=jnp.float32)
    proj_w = jax.random.normal(k_p, (Cin * H * W, feature_dim), dtype=jnp.float32) * 0.02
    # SimpleLinear weight is (out, in) in PyTorch; store transposed (in, out).
    fc_w = jax.random.normal(k_w, (feature_dim, num_classes), dtype=jnp.float32) * 0.02
    fc_b = jax.random.normal(k_b, (num_classes,), dtype=jnp.float32) * 0.01

    # Deterministic BiasLayer parameters (alpha_i, beta_i) per task.
    layer_alphas = [1.0, 0.9]
    layer_betas = [0.0, 0.05]

    # Host-side folding / padding: done ONCE per task configuration.
    params = prepare_incnet_params(proj_w, fc_w, fc_b, task_sizes,
                                   layer_alphas, layer_betas,
                                   bias_correction=True)

    out = incremental_net_with_bias_forward(x, params)
    jax.block_until_ready(out["logits"])
    jax.block_until_ready(out["features"])

    # Plain-JAX f32 reference for correctness.  Features are now an f32 MXU
    # matmul (tight tolerance); logits go through the host-folded bf16 PW
    # weights (looser tolerance).
    x_flat = x.reshape(B, -1)
    feats_ref = x_flat @ proj_w
    logits_ref = feats_ref @ fc_w + fc_b
    off = 0
    logits_bc = logits_ref
    for i, ts in enumerate(task_sizes):
        seg = layer_alphas[i] * logits_bc[:, off:off + ts] + layer_betas[i]
        logits_bc = logits_bc.at[:, off:off + ts].set(seg)
        off += ts

    np.testing.assert_allclose(np.asarray(out["features"]), np.asarray(feats_ref),
                               rtol=5e-3, atol=5e-3)
    np.testing.assert_allclose(np.asarray(out["logits"]), np.asarray(logits_bc),
                               rtol=2e-2, atol=2e-2)
    assert out["features"].shape == (B, feature_dim)
    assert out["logits"].shape == (B, num_classes)
    print("KERNEL_OK")
</pallas_src>

<mosaic_0001>
module attributes {stable_mosaic.version = 11 : i64} {
  func.func @incnet_kernel(%arg0: memref<16x768xf32, #tpu.memory_space<vmem>>, %arg1: memref<768x512xf32, #tpu.memory_space<vmem>>, %arg2: memref<768x128xbf16, #tpu.memory_space<vmem>>, %arg3: memref<1x128xf32, #tpu.memory_space<vmem>>, %arg4: memref<16x512xf32, #tpu.memory_space<vmem>>, %arg5: memref<16x128xf32, #tpu.memory_space<vmem>>) attributes {dimension_semantics = [], scalar_prefetch = 0 : i64, scratch_operands = 0 : i64, tpu.core_type = #tpu.core_type<tc>} {
    %c0 = arith.constant 0 : index
    %c0_0 = arith.constant 0 : index
    %0 = vector.load %arg0[%c0, %c0_0] : memref<16x768xf32, #tpu.memory_space<vmem>>, vector<16x768xf32>
    %c0_1 = arith.constant 0 : index
    %c0_2 = arith.constant 0 : index
    %1 = vector.load %arg1[%c0_1, %c0_2] : memref<768x512xf32, #tpu.memory_space<vmem>>, vector<768x512xf32>
    %cst = arith.constant dense<0.000000e+00> : vector<16x512xf32>
    %2 = tpu.matmul %0, %1, %cst {dimension_numbers = #tpu.dot_dimension_numbers<[1], [0], [0], [1], [0, 0, 1, 1], [], []>} : vector<16x768xf32>, vector<768x512xf32>, vector<16x512xf32> -> vector<16x512xf32>
    %c0_3 = arith.constant 0 : index
    %c0_4 = arith.constant 0 : index
    %3 = vector.load %arg4[%c0_3, %c0_4] : memref<16x512xf32, #tpu.memory_space<vmem>>, vector<16x512xf32>
    tpu.vector_store %arg4[%c0_3, %c0_4], %2 {strides = array<i32>} : memref<16x512xf32, #tpu.memory_space<vmem>>, vector<16x512xf32>,
    %4 = arith.truncf %0 : vector<16x768xf32> to vector<16x768xbf16>
    %c0_5 = arith.constant 0 : index
    %c0_6 = arith.constant 0 : index
    %5 = vector.load %arg2[%c0_5, %c0_6] : memref<768x128xbf16, #tpu.memory_space<vmem>>, vector<768x128xbf16>
    %cst_7 = arith.constant dense<0.000000e+00> : vector<16x128xf32>
    %6 = tpu.matmul %4, %5, %cst_7 {dimension_numbers = #tpu.dot_dimension_numbers<[1], [0], [0], [1], [0, 0, 1, 1], [], []>} : vector<16x768xbf16>, vector<768x128xbf16>, vector<16x128xf32> -> vector<16x128xf32>
    %c0_8 = arith.constant 0 : index
    %c0_9 = arith.constant 0 : index
    %7 = vector.load %arg3[%c0_8, %c0_9] : memref<1x128xf32, #tpu.memory_space<vmem>>, vector<1x128xf32>
    %8 = vector.broadcast %7 : vector<1x128xf32> to vector<16x128xf32>
    %9 = arith.addf %6, %8 : vector<16x128xf32>
    %c0_10 = arith.constant 0 : index
    %c0_11 = arith.constant 0 : index
    %10 = vector.load %arg5[%c0_10, %c0_11] : memref<16x128xf32, #tpu.memory_space<vmem>>, vector<16x128xf32>
    tpu.vector_store %arg5[%c0_10, %c0_11], %9 {strides = array<i32>} : memref<16x128xf32, #tpu.memory_space<vmem>>, vector<16x128xf32>,
    return
  }
}

</mosaic_0001>

<llo_original>
// kernel: _incnet_forward.1
$region0: #{_incnet_forward.1}
  #allocation0 [shape = 'u32[]', space=smem, size = 0x4, offset = 0x4, fixed_abs, tag = 'smem constant byte address 0x4 - core index']
  #allocation1 [shape = 'u32[144,128]{1,0:T(1,128)}', space=vmem, size = 0x12000, scoped, tag = 'internal scratch']
  %s0 = inlined_call_operand.vmem [shape: f32[16,768], index: 0, kind: input, shape index: {}]
  %s1 = inlined_call_operand.hbm [shape: f32[768,512], index: 1, kind: input, shape index: {}]
  %s2 = inlined_call_operand.hbm [shape: bf16[768,128], index: 2, kind: input, shape index: {}]
  %s3 = inlined_call_operand.hbm [shape: f32[1,128], index: 3, kind: input, shape index: {}]
  %s4 = inlined_call_operand.vmem [shape: f32[16,512], index: 4, kind: output, shape index: {0}]
  %s5 = inlined_call_operand.vmem [shape: f32[16,128], index: 5, kind: output, shape index: {1}]
  %6 = xla_tuple %s4, %s5
  %s7 = sld [smem:[#allocation0]]
  $region46: #{_incnet_forward.1} parent=0
    _
  %s9 = ssub.s32 1, %s7
  %s10 = scalar_select 0, %s9, %s7
  $region1: #{_incnet_forward.1} parent=0
    #allocation2 [shape = 'u8[1572864]{0}', space=vmem, size = 0x180000, scoped, tag = 'input window, operand 1, single buffered']
    #allocation3 [shape = 's32[1]{0}', space=sflag, size = 0x4, scoped, tag = 'scoped memory for _incnet_forward.1']
    #allocation4 [shape = 'u8[196608]{0}', space=vmem, size = 0x30000, scoped, tag = 'input window, operand 2, single buffered']
    #allocation5 [shape = 's32[1]{0}', space=sflag, size = 0x4, scoped, tag = 'scoped memory for _incnet_forward.1']
    #allocation6 [shape = 'u8[512]{0}', space=vmem, size = 0x400, scoped, tag = 'input window, operand 3, single buffered']
    %11 = vsyncpa [#allocation3], 0
    %12 = vsyncpa [#allocation5], 0
    // Predicated region
    $region2: #{_incnet_forward.1} parent=1 // pred_check
      _
    $region3: #{_incnet_forward.1} parent=1 // pred_check_branch
      %14 = sbr.rel (0) target = $region5
    $region4: #{_incnet_forward.1} parent=1 // pred_region
      _
    $region5: #{_incnet_forward.1} parent=1 // pred_fallthru
      _
    // Predicated region
    $region6: #{_incnet_forward.1} parent=1 // pred_check
      _
    $region7: #{_incnet_forward.1} parent=1 // pred_check_branch
      %16 = sbr.rel (0) target = $region9
    $region8: #{_incnet_forward.1} parent=1 // pred_region
      %s18 = ssub.s32 49152, 49152
      %19 = vsyncadd [#allocation3], %s18
      %s20 = sshll.u32 [#allocation2], 4
      %s21 = int_to_ptr.vmem [resolvable:$true] %s20
      %26 = dma.hbm_to_vmem [thread:$0]  %s1, 49152, %s21, [#allocation3], 512, 512, 32
    $region9: #{_incnet_forward.1} parent=1 // pred_fallthru
      _
    // Predicated region
    $region10: #{_incnet_forward.1} parent=1 // pred_check
      _
    $region11: #{_incnet_forward.1} parent=1 // pred_check_branch
      %28 = sbr.rel (0) target = $region13
    $region12: #{_incnet_forward.1} parent=1 // pred_region
      %s30 = ssub.s32 6144, 6144
      %31 = vsyncadd [#allocation5], %s30
      %s32 = sshll.u32 [#allocation4], 4
      %s33 = int_to_ptr.vmem [resolvable:$true] %s32
      %38 = dma.hbm_to_vmem [thread:$0]  %s2, 6144, %s33, [#allocation5], 64, 64, 4
    $region13: #{_incnet_forward.1} parent=1 // pred_fallthru
      _
    // Predicated region
    $region14: #{_incnet_forward.1} parent=1 // pred_check
      _
    $region15: #{_incnet_forward.1} parent=1 // pred_check_branch
      %40 = sbr.rel (0) target = $region17
    $region16: #{_incnet_forward.1} parent=1 // pred_region
      %s42 = ssub.s32 16, 16
      %43 = vsyncadd [#allocation5], %s42
      %s45 = sshll.u32 [#allocation6], 4
      %s46 = int_to_ptr.vmem [resolvable:$true] %s45
      %48 = dma.hbm_to_vmem [thread:$0]  %s3, 16, %s46, [#allocation5]
    $region17: #{_incnet_forward.1} parent=1 // pred_fallthru
      _
    // Predicated region
    $region18: #{_incnet_forward.1} parent=1 // pred_check
      _
    $region19: #{_incnet_forward.1} parent=1 // pred_check_branch
      %50 = sbr.rel (0) target = $region21
    $region20: #{_incnet_forward.1} parent=1 // pred_region
      %51 = dma.done [#allocation3], 49152
    $region21: #{_incnet_forward.1} parent=1 // pred_fallthru
      _
    // Predicated region
    $region22: #{_incnet_forward.1} parent=1 // pred_check
      _
    $region23: #{_incnet_forward.1} parent=1 // pred_check_branch
      %53 = sbr.rel (0) target = $region25
    $region24: #{_incnet_forward.1} parent=1 // pred_region
      %54 = dma.done [#allocation5], 6144
    $region25: #{_incnet_forward.1} parent=1 // pred_fallthru
      _
    // Predicated region
    $region26: #{_incnet_forward.1} parent=1 // pred_check
      _
    $region27: #{_incnet_forward.1} parent=1 // pred_check_branch
      %56 = sbr.rel (0) target = $region29
    $region28: #{_incnet_forward.1} parent=1 // pred_region
      %57 = dma.done [#allocation5], 16
    $region29: #{_incnet_forward.1} parent=1 // pred_fallthru
      _
    %v59 = vld [vmem:[%s0] sm:$0xff]
    %v60 = vld [vmem:[%s0 + $0x8] sm:$0xff]
    %v61 = vld [vmem:[%s0 + $0x10] sm:$0xff]
    %v62 = vld [vmem:[%s0 + $0x18] sm:$0xff]
    %v63 = vld [vmem:[%s0 + $0x20] sm:$0xff]
    %v64 = vld [vmem:[%s0 + $0x28] sm:$0xff]
    %v65 = vld [vmem:[%s0 + $0x30] sm:$0xff]
    %v66 = vld [vmem:[%s0 + $0x38] sm:$0xff]
    %v67 = vld [vmem:[%s0 + $0x40] sm:$0xff]
    %v68 = vld [vmem:[%s0 + $0x48] sm:$0xff]
    %v69 = vld [vmem:[%s0 + $0x50] sm:$0xff]
    %v70 = vld [vmem:[%s0 + $0x58] sm:$0xff]
    %v71 = vld [vmem:[#allocation2] sm:$0xff]
    %v72 = vld [vmem:[#allocation2 + $0x8] sm:$0xff]
    %v73 = vld [vmem:[#allocation2 + $0x10] sm:$0xff]
    %v74 = vld [vmem:[#allocation2 + $0x18] sm:$0xff]
    %v75 = vld [vmem:[#allocation2 + $0x20] sm:$0xff]
    %v76 = vld [vmem:[#allocation2 + $0x28] sm:$0xff]
    %v77 = vld [vmem:[#allocation2 + $0x30] sm:$0xff]
    %v78 = vld [vmem:[#allocation2 + $0x38] sm:$0xff]
    %v79 = vld [vmem:[#allocation2 + $0x40] sm:$0xff]
    %v80 = vld [vmem:[#allocation2 + $0x48] sm:$0xff]
    %v81 = vld [vmem:[#allocation2 + $0x50] sm:$0xff]
    %v82 = vld [vmem:[#allocation2 + $0x58] sm:$0xff]
    %v83 = vld [vmem:[#allocation2 + $0x60] sm:$0xff]
    %v84 = vld [vmem:[#allocation2 + $0x68] sm:$0xff]
    %v85 = vld [vmem:[#allocation2 + $0x70] sm:$0xff]
    %v86 = vld [vmem:[#allocation2 + $0x78] sm:$0xff]
    %v87 = vld [vmem:[#allocation2 + $0x80] sm:$0xff]
    %v88 = vld [vmem:[#allocation2 + $0x88] sm:$0xff]
    %v89 = vld [vmem:[#allocation2 + $0x90] sm:$0xff]
    %v90 = vld [vmem:[#allocation2 + $0x98] sm:$0xff]
    %v91 = vld [vmem:[#allocation2 + $0xa0] sm:$0xff]
    %v92 = vld [vmem:[#allocation2 + $0xa8] sm:$0xff]
    %v93 = vld [vmem:[#allocation2 + $0xb0] sm:$0xff]
    %v94 = vld [vmem:[#allocation2 + $0xb8] sm:$0xff]
    %v95 = vld [vmem:[#allocation2 + $0xc0] sm:$0xff]
    %v96 = vld [vmem:[#allocation2 + $0xc8] sm:$0xff]
    %v97 = vld [vmem:[#allocation2 + $0xd0] sm:$0xff]
    %v98 = vld [vmem:[#allocation2 + $0xd8] sm:$0xff]
    %v99 = vld [vmem:[#allocation2 + $0xe0] sm:$0xff]
    %v100 = vld [vmem:[#allocation2 + $0xe8] sm:$0xff]
    %v101 = vld [vmem:[#allocation2 + $0xf0] sm:$0xff]
    %v102 = vld [vmem:[#allocation2 + $0xf8] sm:$0xff]
    %v103 = vld [vmem:[#allocation2 + $0x100] sm:$0xff]
    %v104 = vld [vmem:[#allocation2 + $0x108] sm:$0xff]
    %v105 = vld [vmem:[#allocation2 + $0x110] sm:$0xff]
    %v106 = vld [vmem:[#allocation2 + $0x118] sm:$0xff]
    %v107 = vld [vmem:[#allocation2 + $0x120] sm:$0xff]
    %v108 = vld [vmem:[#allocation2 + $0x128] sm:$0xff]
    %v109 = vld [vmem:[#allocation2 + $0x130] sm:$0xff]
    %v110 = vld [vmem:[#allocation2 + $0x138] sm:$0xff]
    %v111 = vld [vmem:[#allocation2 + $0x140] sm:$0xff]
    %v112 = vld [vmem:[#allocation2 + $0x148] sm:$0xff]
    %v113 = vld [vmem:[#allocation2 + $0x150] sm:$0xff]
    %v114 = vld [vmem:[#allocation2 + $0x158] sm:$0xff]
    %v115 = vld [vmem:[#allocation2 + $0x160] sm:$0xff]
    %v116 = vld [vmem:[#allocation2 + $0x168] sm:$0xff]
    %v117 = vld [vmem:[#allocation2 + $0x170] sm:$0xff]
    %v118 = vld [vmem:[#allocation2 + $0x178] sm:$0xff]
    %v119 = vld [vmem:[#allocation2 + $0x180] sm:$0xff]
    %v120 = vld [vmem:[#allocation2 + $0x188] sm:$0xff]
    %v121 = vld [vmem:[#allocation2 + $0x190] sm:$0xff]
    %v122 = vld [vmem:[#allocation2 + $0x198] sm:$0xff]
    %v123 = vld [vmem:[#allocation2 + $0x1a0] sm:$0xff]
    %v124 = vld [vmem:[#allocation2 + $0x1a8] sm:$0xff]
    %v125 = vld [vmem:[#allocation2 + $0x1b0] sm:$0xff]
    %v126 = vld [vmem:[#allocation2 + $0x1b8] sm:$0xff]
    %v127 = vld [vmem:[#allocation2 + $0x1c0] sm:$0xff]
    %v128 = vld [vmem:[#allocation2 + $0x1c8] sm:$0xff]
    %v129 = vld [vmem:[#allocation2 + $0x1d0] sm:$0xff]
    %v130 = vld [vmem:[#allocation2 + $0x1d8] sm:$0xff]
    %v131 = vld [vmem:[#allocation2 + $0x1e0] sm:$0xff]
    %v132 = vld [vmem:[#allocation2 + $0x1e8] sm:$0xff]
    %v133 = vld [vmem:[#allocation2 + $0x1f0] sm:$0xff]
    %v134 = vld [vmem:[#allocation2 + $0x1f8] sm:$0xff]
    %v135 = vld [vmem:[#allocation2 + $0x200] sm:$0xff]
    %v136 = vld [vmem:[#allocation2 + $0x208] sm:$0xff]
    %v137 = vld [vmem:[#allocation2 + $0x210] sm:$0xff]
    %v138 = vld [vmem:[#allocation2 + $0x218] sm:$0xff]
    %v139 = vld [vmem:[#allocation2 + $0x220] sm:$0xff]
    %v140 = vld [vmem:[#allocation2 + $0x228] sm:$0xff]
    %v141 = vld [vmem:[#allocation2 + $0x230] sm:$0xff]
    %v142 = vld [vmem:[#allocation2 + $0x238] sm:$0xff]
    %v143 = vld [vmem:[#allocation2 + $0x240] sm:$0xff]
    %v144 = vld [vmem:[#allocation2 + $0x248] sm:$0xff]
    %v145 = vld [vmem:[#allocation2 + $0x250] sm:$0xff]
    %v146 = vld [vmem:[#allocation2 + $0x258] sm:$0xff]
    %v147 = vld [vmem:[#allocation2 + $0x260] sm:$0xff]
    %v148 = vld [vmem:[#allocation2 + $0x268] sm:$0xff]
    %v149 = vld [vmem:[#allocation2 + $0x270] sm:$0xff]
    %v150 = vld [vmem:[#allocation2 + $0x278] sm:$0xff]
    %v151 = vld [vmem:[#allocation2 + $0x280] sm:$0xff]
    %v152 = vld [vmem:[#allocation2 + $0x288] sm:$0xff]
    %v153 = vld [vmem:[#allocation2 + $0x290] sm:$0xff]
    %v154 = vld [vmem:[#allocation2 + $0x298] sm:$0xff]
    %v155 = vld [vmem:[#allocation2 + $0x2a0] sm:$0xff]
    %v156 = vld [vmem:[#allocation2 + $0x2a8] sm:$0xff]
    %v157 = vld [vmem:[#allocation2 + $0x2b0] sm:$0xff]
    %v158 = vld [vmem:[#allocation2 + $0x2b8] sm:$0xff]
    %v159 = vld [vmem:[#allocation2 + $0x2c0] sm:$0xff]
    %v160 = vld [vmem:[#allocation2 + $0x2c8] sm:$0xff]
    %v161 = vld [vmem:[#allocation2 + $0x2d0] sm:$0xff]
    %v162 = vld [vmem:[#allocation2 + $0x2d8] sm:$0xff]
    %v163 = vld [vmem:[#allocation2 + $0x2e0] sm:$0xff]
    %v164 = vld [vmem:[#allocation2 + $0x2e8] sm:$0xff]
    %v165 = vld [vmem:[#allocation2 + $0x2f0] sm:$0xff]
    %v166 = vld [vmem:[#allocation2 + $0x2f8] sm:$0xff]
    %v167 = vld [vmem:[#allocation2 + $0x300] sm:$0xff]
    %v168 = vld [vmem:[#allocation2 + $0x308] sm:$0xff]
    %v169 = vld [vmem:[#allocation2 + $0x310] sm:$0xff]
    %v170 = vld [vmem:[#allocation2 + $0x318] sm:$0xff]
    %v171 = vld [vmem:[#allocation2 + $0x320] sm:$0xff]
    %v172 = vld [vmem:[#allocation2 + $0x328] sm:$0xff]
    %v173 = vld [vmem:[#allocation2 + $0x330] sm:$0xff]
    %v174 = vld [vmem:[#allocation2 + $0x338] sm:$0xff]
    %v175 = vld [vmem:[#allocation2 + $0x340] sm:$0xff]
    %v176 = vld [vmem:[#allocation2 + $0x348] sm:$0xff]
    %v177 = vld [vmem:[#allocation2 + $0x350] sm:$0xff]
    %v178 = vld [vmem:[#allocation2 + $0x358] sm:$0xff]
    %v179 = vld [vmem:[#allocation2 + $0x360] sm:$0xff]
    %v180 = vld [vmem:[#allocation2 + $0x368] sm:$0xff]
    %v181 = vld [vmem:[#allocation2 + $0x370] sm:$0xff]
    %v182 = vld [vmem:[#allocation2 + $0x378] sm:$0xff]
    %v183 = vld [vmem:[#allocation2 + $0x380] sm:$0xff]
    %v184 = vld [vmem:[#allocation2 + $0x388] sm:$0xff]
    %v185 = vld [vmem:[#allocation2 + $0x390] sm:$0xff]
    %v186 = vld [vmem:[#allocation2 + $0x398] sm:$0xff]
    %v187 = vld [vmem:[#allocation2 + $0x3a0] sm:$0xff]
    %v188 = vld [vmem:[#allocation2 + $0x3a8] sm:$0xff]
    %v189 = vld [vmem:[#allocation2 + $0x3b0] sm:$0xff]
    %v190 = vld [vmem:[#allocation2 + $0x3b8] sm:$0xff]
    %v191 = vld [vmem:[#allocation2 + $0x3c0] sm:$0xff]
    %v192 = vld [vmem:[#allocation2 + $0x3c8] sm:$0xff]
    %v193 = vld [vmem:[#allocation2 + $0x3d0] sm:$0xff]
    %v194 = vld [vmem:[#allocation2 + $0x3d8] sm:$0xff]
    %v195 = vld [vmem:[#allocation2 + $0x3e0] sm:$0xff]
    %v196 = vld [vmem:[#allocation2 + $0x3e8] sm:$0xff]
    %v197 = vld [vmem:[#allocation2 + $0x3f0] sm:$0xff]
    %v198 = vld [vmem:[#allocation2 + $0x3f8] sm:$0xff]
    %v199 = vld [vmem:[#allocation2 + $0x400] sm:$0xff]
    %v200 = vld [vmem:[#allocation2 + $0x408] sm:$0xff]
    %v201 = vld [vmem:[#allocation2 + $0x410] sm:$0xff]
    %v202 = vld [vmem:[#allocation2 + $0x418] sm:$0xff]
    %v203 = vld [vmem:[#allocation2 + $0x420] sm:$0xff]
    %v204 = vld [vmem:[#allocation2 + $0x428] sm:$0xff]
    %v205 = vld [vmem:[#allocation2 + $0x430] sm:$0xff]
    %v206 = vld [vmem:[#allocation2 + $0x438] sm:$0xff]
    %v207 = vld [vmem:[#allocation2 + $0x440] sm:$0xff]
    %v208 = vld [vmem:[#allocation2 + $0x448] sm:$0xff]
    %v209 = vld [vmem:[#allocation2 + $0x450] sm:$0xff]
    %v210 = vld [vmem:[#allocation2 + $0x458] sm:$0xff]
    %v211 = vld [vmem:[#allocation2 + $0x460] sm:$0xff]
    %v212 = vld [vmem:[#allocation2 + $0x468] sm:$0xff]
    %v213 = vld [vmem:[#allocation2 + $0x470] sm:$0xff]
    %v214 = vld [vmem:[#allocation2 + $0x478] sm:$0xff]
    %v215 = vld [vmem:[#allocation2 + $0x480] sm:$0xff]
    %v216 = vld [vmem:[#allocation2 + $0x488] sm:$0xff]
    %v217 = vld [vmem:[#allocation2 + $0x490] sm:$0xff]
    %v218 = vld [vmem:[#allocation2 + $0x498] sm:$0xff]
    %v219 = vld [vmem:[#allocation2 + $0x4a0] sm:$0xff]
    %v220 = vld [vmem:[#allocation2 + $0x4a8] sm:$0xff]
    %v221 = vld [vmem:[#allocation2 + $0x4b0] sm:$0xff]
    %v222 = vld [vmem:[#allocation2 + $0x4b8] sm:$0xff]
    %v223 = vld [vmem:[#allocation2 + $0x4c0] sm:$0xff]
    %v224 = vld [vmem:[#allocation2 + $0x4c8] sm:$0xff]
    %v225 = vld [vmem:[#allocation2 + $0x4d0] sm:$0xff]
    %v226 = vld [vmem:[#allocation2 + $0x4d8] sm:$0xff]
    %v227 = vld [vmem:[#allocation2 + $0x4e0] sm:$0xff]
    %v228 = vld [vmem:[#allocation2 + $0x4e8] sm:$0xff]
    %v229 = vld [vmem:[#allocation2 + $0x4f0] sm:$0xff]
    %v230 = vld [vmem:[#allocation2 + $0x4f8] sm:$0xff]
    %v231 = vld [vmem:[#allocation2 + $0x500] sm:$0xff]
    %v232 = vld [vmem:[#allocation2 + $0x508] sm:$0xff]
    %v233 = vld [vmem:[#allocation2 + $0x510] sm:$0xff]
    %v234 = vld [vmem:[#allocation2 + $0x518] sm:$0xff]
    %v235 = vld [vmem:[#allocation2 + $0x520] sm:$0xff]
    %v236 = vld [vmem:[#allocation2 + $0x528] sm:$0xff]
    %v237 = vld [vmem:[#allocation2 + $0x530] sm:$0xff]
    %v238 = vld [vmem:[#allocation2 + $0x538] sm:$0xff]
    %v239 = vld [vmem:[#allocation2 + $0x540] sm:$0xff]
    %v240 = vld [vmem:[#allocation2 + $0x548] sm:$0xff]
    %v241 = vld [vmem:[#allocation2 + $0x550] sm:$0xff]
    %v242 = vld [vmem:[#allocation2 + $0x558] sm:$0xff]
    %v243 = vld [vmem:[#allocation2 + $0x560] sm:$0xff]
    %v244 = vld [vmem:[#allocation2 + $0x568] sm:$0xff]
    %v245 = vld [vmem:[#allocation2 + $0x570] sm:$0xff]
    %v246 = vld [vmem:[#allocation2 + $0x578] sm:$0xff]
    %v247 = vld [vmem:[#allocation2 + $0x580] sm:$0xff]
    %v248 = vld [vmem:[#allocation2 + $0x588] sm:$0xff]
    %v249 = vld [vmem:[#allocation2 + $0x590] sm:$0xff]
    %v250 = vld [vmem:[#allocation2 + $0x598] sm:$0xff]
    %v251 = vld [vmem:[#allocation2 + $0x5a0] sm:$0xff]
    %v252 = vld [vmem:[#allocation2 + $0x5a8] sm:$0xff]
    %v253 = vld [vmem:[#allocation2 + $0x5b0] sm:$0xff]
    %v254 = vld [vmem:[#allocation2 + $0x5b8] sm:$0xff]
    %v255 = vld [vmem:[#allocation2 + $0x5c0] sm:$0xff]
    %v256 = vld [vmem:[#allocation2 + $0x5c8] sm:$0xff]
    %v257 = vld [vmem:[#allocation2 + $0x5d0] sm:$0xff]
    %v258 = vld [vmem:[#allocation2 + $0x5d8] sm:$0xff]
    %v259 = vld [vmem:[#allocation2 + $0x5e0] sm:$0xff]
    %v260 = vld [vmem:[#allocation2 + $0x5e8] sm:$0xff]
    %v261 = vld [vmem:[#allocation2 + $0x5f0] sm:$0xff]
    %v262 = vld [vmem:[#allocation2 + $0x5f8] sm:$0xff]
    %v263 = vld [vmem:[#allocation2 + $0x600] sm:$0xff]
    %v264 = vld [vmem:[#allocation2 + $0x608] sm:$0xff]
    %v265 = vld [vmem:[#allocation2 + $0x610] sm:$0xff]
    %v266 = vld [vmem:[#allocation2 + $0x618] sm:$0xff]
    %v267 = vld [vmem:[#allocation2 + $0x620] sm:$0xff]
    %v268 = vld [vmem:[#allocation2 + $0x628] sm:$0xff]
    %v269 = vld [vmem:[#allocation2 + $0x630] sm:$0xff]
    %v270 = vld [vmem:[#allocation2 + $0x638] sm:$0xff]
    %v271 = vld [vmem:[#allocation2 + $0x640] sm:$0xff]
    %v272 = vld [vmem:[#allocation2 + $0x648] sm:$0xff]
    %v273 = vld [vmem:[#allocation2 + $0x650] sm:$0xff]
    %v274 = vld [vmem:[#allocation2 + $0x658] sm:$0xff]
    %v275 = vld [vmem:[#allocation2 + $0x660] sm:$0xff]
    %v276 = vld [vmem:[#allocation2 + $0x668] sm:$0xff]
    %v277 = vld [vmem:[#allocation2 + $0x670] sm:$0xff]
    %v278 = vld [vmem:[#allocation2 + $0x678] sm:$0xff]
    %v279 = vld [vmem:[#allocation2 + $0x680] sm:$0xff]
    %v280 = vld [vmem:[#allocation2 + $0x688] sm:$0xff]
    %v281 = vld [vmem:[#allocation2 + $0x690] sm:$0xff]
    %v282 = vld [vmem:[#allocation2 + $0x698] sm:$0xff]
    %v283 = vld [vmem:[#allocation2 + $0x6a0] sm:$0xff]
    %v284 = vld [vmem:[#allocation2 + $0x6a8] sm:$0xff]
    %v285 = vld [vmem:[#allocation2 + $0x6b0] sm:$0xff]
    %v286 = vld [vmem:[#allocation2 + $0x6b8] sm:$0xff]
    %v287 = vld [vmem:[#allocation2 + $0x6c0] sm:$0xff]
    %v288 = vld [vmem:[#allocation2 + $0x6c8] sm:$0xff]
    %v289 = vld [vmem:[#allocation2 + $0x6d0] sm:$0xff]
    %v290 = vld [vmem:[#allocation2 + $0x6d8] sm:$0xff]
    %v291 = vld [vmem:[#allocation2 + $0x6e0] sm:$0xff]
    %v292 = vld [vmem:[#allocation2 + $0x6e8] sm:$0xff]
    %v293 = vld [vmem:[#allocation2 + $0x6f0] sm:$0xff]
    %v294 = vld [vmem:[#allocation2 + $0x6f8] sm:$0xff]
    %v295 = vld [vmem:[#allocation2 + $0x700] sm:$0xff]
    %v296 = vld [vmem:[#allocation2 + $0x708] sm:$0xff]
    %v297 = vld [vmem:[#allocation2 + $0x710] sm:$0xff]
    %v298 = vld [vmem:[#allocation2 + $0x718] sm:$0xff]
    %v299 = vld [vmem:[#allocation2 + $0x720] sm:$0xff]
    %v300 = vld [vmem:[#allocation2 + $0x728] sm:$0xff]
    %v301 = vld [vmem:[#allocation2 + $0x730] sm:$0xff]
    %v302 = vld [vmem:[#allocation2 + $0x738] sm:$0xff]
    %v303 = vld [vmem:[#allocation2 + $0x740] sm:$0xff]
    %v304 = vld [vmem:[#allocation2 + $0x748] sm:$0xff]
    %v305 = vld [vmem:[#allocation2 + $0x750] sm:$0xff]
    %v306 = vld [vmem:[#allocation2 + $0x758] sm:$0xff]
    %v307 = vld [vmem:[#allocation2 + $0x760] sm:$0xff]
    %v308 = vld [vmem:[#allocation2 + $0x768] sm:$0xff]
    %v309 = vld [vmem:[#allocation2 + $0x770] sm:$0xff]
    %v310 = vld [vmem:[#allocation2 + $0x778] sm:$0xff]
    %v311 = vld [vmem:[#allocation2 + $0x780] sm:$0xff]
    %v312 = vld [vmem:[#allocation2 + $0x788] sm:$0xff]
    %v313 = vld [vmem:[#allocation2 + $0x790] sm:$0xff]
    %v314 = vld [vmem:[#allocation2 + $0x798] sm:$0xff]
    %v315 = vld [vmem:[#allocation2 + $0x7a0] sm:$0xff]
    %v316 = vld [vmem:[#allocation2 + $0x7a8] sm:$0xff]
    %v317 = vld [vmem:[#allocation2 + $0x7b0] sm:$0xff]
    %v318 = vld [vmem:[#allocation2 + $0x7b8] sm:$0xff]
    %v319 = vld [vmem:[#allocation2 + $0x7c0] sm:$0xff]
    %v320 = vld [vmem:[#allocation2 + $0x7c8] sm:$0xff]
    %v321 = vld [vmem:[#allocation2 + $0x7d0] sm:$0xff]
    %v322 = vld [vmem:[#allocation2 + $0x7d8] sm:$0xff]
    %v323 = vld [vmem:[#allocation2 + $0x7e0] sm:$0xff]
    %v324 = vld [vmem:[#allocation2 + $0x7e8] sm:$0xff]
    %v325 = vld [vmem:[#allocation2 + $0x7f0] sm:$0xff]
    %v326 = vld [vmem:[#allocation2 + $0x7f8] sm:$0xff]
    %v327 = vld [vmem:[#allocation2 + $0x800] sm:$0xff]
    %v328 = vld [vmem:[#allocation2 + $0x808] sm:$0xff]
    %v329 = vld [vmem:[#allocation2 + $0x810] sm:$0xff]
    %v330 = vld [vmem:[#allocation2 + $0x818] sm:$0xff]
    %v331 = vld [vmem:[#allocation2 + $0x820] sm:$0xff]
    %v332 = vld [vmem:[#allocation2 + $0x828] sm:$0xff]
    %v333 = vld [vmem:[#allocation2 + $0x830] sm:$0xff]
    %v334 = vld [vmem:[#allocation2 + $0x838] sm:$0xff]
    %v335 = vld [vmem:[#allocation2 + $0x840] sm:$0xff]
    %v336 = vld [vmem:[#allocation2 + $0x848] sm:$0xff]
    %v337 = vld [vmem:[#allocation2 + $0x850] sm:$0xff]
    %v338 = vld [vmem:[#allocation2 + $0x858] sm:$0xff]
    %v339 = vld [vmem:[#allocation2 + $0x860] sm:$0xff]
    %v340 = vld [vmem:[#allocation2 + $0x868] sm:$0xff]
    %v341 = vld [vmem:[#allocation2 + $0x870] sm:$0xff]
    %v342 = vld [vmem:[#allocation2 + $0x878] sm:$0xff]
    %v343 = vld [vmem:[#allocation2 + $0x880] sm:$0xff]
    %v344 = vld [vmem:[#allocation2 + $0x888] sm:$0xff]
    %v345 = vld [vmem:[#allocation2 + $0x890] sm:$0xff]
    %v346 = vld [vmem:[#allocation2 + $0x898] sm:$0xff]
    %v347 = vld [vmem:[#allocation2 + $0x8a0] sm:$0xff]
    %v348 = vld [vmem:[#allocation2 + $0x8a8] sm:$0xff]
    %v349 = vld [vmem:[#allocation2 + $0x8b0] sm:$0xff]
    %v350 = vld [vmem:[#allocation2 + $0x8b8] sm:$0xff]
    %v351 = vld [vmem:[#allocation2 + $0x8c0] sm:$0xff]
    %v352 = vld [vmem:[#allocation2 + $0x8c8] sm:$0xff]
    %v353 = vld [vmem:[#allocation2 + $0x8d0] sm:$0xff]
    %v354 = vld [vmem:[#allocation2 + $0x8d8] sm:$0xff]
    %v355 = vld [vmem:[#allocation2 + $0x8e0] sm:$0xff]
    %v356 = vld [vmem:[#allocation2 + $0x8e8] sm:$0xff]
    %v357 = vld [vmem:[#allocation2 + $0x8f0] sm:$0xff]
    %v358 = vld [vmem:[#allocation2 + $0x8f8] sm:$0xff]
    %v359 = vld [vmem:[#allocation2 + $0x900] sm:$0xff]
    %v360 = vld [vmem:[#allocation2 + $0x908] sm:$0xff]
    %v361 = vld [vmem:[#allocation2 + $0x910] sm:$0xff]
    %v362 = vld [vmem:[#allocation2 + $0x918] sm:$0xff]
    %v363 = vld [vmem:[#allocation2 + $0x920] sm:$0xff]
    %v364 = vld [vmem:[#allocation2 + $0x928] sm:$0xff]
    %v365 = vld [vmem:[#allocation2 + $0x930] sm:$0xff]
    %v366 = vld [vmem:[#allocation2 + $0x938] sm:$0xff]
    %v367 = vld [vmem:[#allocation2 + $0x940] sm:$0xff]
    %v368 = vld [vmem:[#allocation2 + $0x948] sm:$0xff]
    %v369 = vld [vmem:[#allocation2 + $0x950] sm:$0xff]
    %v370 = vld [vmem:[#allocation2 + $0x958] sm:$0xff]
    %v371 = vld [vmem:[#allocation2 + $0x960] sm:$0xff]
    %v372 = vld [vmem:[#allocation2 + $0x968] sm:$0xff]
    %v373 = vld [vmem:[#allocation2 + $0x970] sm:$0xff]
    %v374 = vld [vmem:[#allocation2 + $0x978] sm:$0xff]
    %v375 = vld [vmem:[#allocation2 + $0x980] sm:$0xff]
    %v376 = vld [vmem:[#allocation2 + $0x988] sm:$0xff]
    %v377 = vld [vmem:[#allocation2 + $0x990] sm:$0xff]
    %v378 = vld [vmem:[#allocation2 + $0x998] sm:$0xff]
    %v379 = vld [vmem:[#allocation2 + $0x9a0] sm:$0xff]
    %v380 = vld [vmem:[#allocation2 + $0x9a8] sm:$0xff]
    %v381 = vld [vmem:[#allocation2 + $0x9b0] sm:$0xff]
    %v382 = vld [vmem:[#allocation2 + $0x9b8] sm:$0xff]
    %v383 = vld [vmem:[#allocation2 + $0x9c0] sm:$0xff]
    %v384 = vld [vmem:[#allocation2 + $0x9c8] sm:$0xff]
    %v385 = vld [vmem:[#allocation2 + $0x9d0] sm:$0xff]
    %v386 = vld [vmem:[#allocation2 + $0x9d8] sm:$0xff]
    %v387 = vld [vmem:[#allocation2 + $0x9e0] sm:$0xff]
    %v388 = vld [vmem:[#allocation2 + $0x9e8] sm:$0xff]
    %v389 = vld [vmem:[#allocation2 + $0x9f0] sm:$0xff]
    %v390 = vld [vmem:[#allocation2 + $0x9f8] sm:$0xff]
    %v391 = vld [vmem:[#allocation2 + $0xa00] sm:$0xff]
    %v392 = vld [vmem:[#allocation2 + $0xa08] sm:$0xff]
    %v393 = vld [vmem:[#allocation2 + $0xa10] sm:$0xff]
    %v394 = vld [vmem:[#allocation2 + $0xa18] sm:$0xff]
    %v395 = vld [vmem:[#allocation2 + $0xa20] sm:$0xff]
    %v396 = vld [vmem:[#allocation2 + $0xa28] sm:$0xff]
    %v397 = vld [vmem:[#allocation2 + $0xa30] sm:$0xff]
    %v398 = vld [vmem:[#allocation2 + $0xa38] sm:$0xff]
    %v399 = vld [vmem:[#allocation2 + $0xa40] sm:$0xff]
    %v400 = vld [vmem:[#allocation2 + $0xa48] sm:$0xff]
    %v401 = vld [vmem:[#allocation2 + $0xa50] sm:$0xff]
    %v402 = vld [vmem:[#allocation2 + $0xa58] sm:$0xff]
    %v403 = vld [vmem:[#allocation2 + $0xa60] sm:$0xff]
    %v404 = vld [vmem:[#allocation2 + $0xa68] sm:$0xff]
    %v405 = vld [vmem:[#allocation2 + $0xa70] sm:$0xff]
    %v406 = vld [vmem:[#allocation2 + $0xa78] sm:$0xff]
    %v407 = vld [vmem:[#allocation2 + $0xa80] sm:$0xff]
    %v408 = vld [vmem:[#allocation2 + $0xa88] sm:$0xff]
    %v409 = vld [vmem:[#allocation2 + $0xa90] sm:$0xff]
    %v410 = vld [vmem:[#allocation2 + $0xa98] sm:$0xff]
    %v411 = vld [vmem:[#allocation2 + $0xaa0] sm:$0xff]
    %v412 = vld [vmem:[#allocation2 + $0xaa8] sm:$0xff]
    %v413 = vld [vmem:[#allocation2 + $0xab0] sm:$0xff]
    %v414 = vld [vmem:[#allocation2 + $0xab8] sm:$0xff]
    %v415 = vld [vmem:[#allocation2 + $0xac0] sm:$0xff]
    %v416 = vld [vmem:[#allocation2 + $0xac8] sm:$0xff]
    %v417 = vld [vmem:[#allocation2 + $0xad0] sm:$0xff]
    %v418 = vld [vmem:[#allocation2 + $0xad8] sm:$0xff]
    %v419 = vld [vmem:[#allocation2 + $0xae0] sm:$0xff]
    %v420 = vld [vmem:[#allocation2 + $0xae8] sm:$0xff]
    %v421 = vld [vmem:[#allocation2 + $0xaf0] sm:$0xff]
    %v422 = vld [vmem:[#allocation2 + $0xaf8] sm:$0xff]
    %v423 = vld [vmem:[#allocation2 + $0xb00] sm:$0xff]
    %v424 = vld [vmem:[#allocation2 + $0xb08] sm:$0xff]
    %v425 = vld [vmem:[#allocation2 + $0xb10] sm:$0xff]
    %v426 = vld [vmem:[#allocation2 + $0xb18] sm:$0xff]
    %v427 = vld [vmem:[#allocation2 + $0xb20] sm:$0xff]
    %v428 = vld [vmem:[#allocation2 + $0xb28] sm:$0xff]
    %v429 = vld [vmem:[#allocation2 + $0xb30] sm:$0xff]
    %v430 = vld [vmem:[#allocation2 + $0xb38] sm:$0xff]
    %v431 = vld [vmem:[#allocation2 + $0xb40] sm:$0xff]
    %v432 = vld [vmem:[#allocation2 + $0xb48] sm:$0xff]
    %v433 = vld [vmem:[#allocation2 + $0xb50] sm:$0xff]
    %v434 = vld [vmem:[#allocation2 + $0xb58] sm:$0xff]
    %v435 = vld [vmem:[#allocation2 + $0xb60] sm:$0xff]
    %v436 = vld [vmem:[#allocation2 + $0xb68] sm:$0xff]
    %v437 = vld [vmem:[#allocation2 + $0xb70] sm:$0xff]
    %v438 = vld [vmem:[#allocation2 + $0xb78] sm:$0xff]
    %v439 = vld [vmem:[#allocation2 + $0xb80] sm:$0xff]
    %v440 = vld [vmem:[#allocation2 + $0xb88] sm:$0xff]
    %v441 = vld [vmem:[#allocation2 + $0xb90] sm:$0xff]
    %v442 = vld [vmem:[#allocation2 + $0xb98] sm:$0xff]
    %v443 = vld [vmem:[#allocation2 + $0xba0] sm:$0xff]
    %v444 = vld [vmem:[#allocation2 + $0xba8] sm:$0xff]
    %v445 = vld [vmem:[#allocation2 + $0xbb0] sm:$0xff]
    %v446 = vld [vmem:[#allocation2 + $0xbb8] sm:$0xff]
    %v447 = vld [vmem:[#allocation2 + $0xbc0] sm:$0xff]
    %v448 = vld [vmem:[#allocation2 + $0xbc8] sm:$0xff]
    %v449 = vld [vmem:[#allocation2 + $0xbd0] sm:$0xff]
    %v450 = vld [vmem:[#allocation2 + $0xbd8] sm:$0xff]
    %v451 = vld [vmem:[#allocation2 + $0xbe0] sm:$0xff]
    %v452 = vld [vmem:[#allocation2 + $0xbe8] sm:$0xff]
    %v453 = vld [vmem:[#allocation2 + $0xbf0] sm:$0xff]
    %v454 = vld [vmem:[#allocation2 + $0xbf8] sm:$0xff]
    %455 = vmatprep.subr.mxu0 %v72
    %456 = vmatpush1.msra.mxu0 %v71
    %457 = vmatprep.subr.mxu0 %v76
    %458 = vmatpush1.msra.mxu0 %v75
    %459 = vmatprep.subr.mxu0 %v80
    %460 = vmatpush1.msra.mxu0 %v79
    %461 = vmatprep.subr.mxu0 %v84
    %462 = vmatpush1.msra.mxu0 %v83
    %463 = vmatprep.subr.mxu0 %v88
    %464 = vmatpush1.msra.mxu0 %v87
    %465 = vmatprep.subr.mxu0 %v92
    %466 = vmatpush1.msra.mxu0 %v91
    %467 = vmatprep.subr.mxu0 %v96
    %468 = vmatpush1.msra.mxu0 %v95
    %469 = vmatprep.subr.mxu0 %v100
    %470 = vmatpush1.msra.mxu0 %v99
    %471 = vmatprep.subr.mxu0 %v104
    %472 = vmatpush1.msra.mxu0 %v103
    %473 = vmatprep.subr.mxu0 %v108
    %474 = vmatpush1.msra.mxu0 %v107
    %475 = vmatprep.subr.mxu0 %v112
    %476 = vmatpush1.msra.mxu0 %v111
    %477 = vmatprep.subr.mxu0 %v116
    %478 = vmatpush1.msra.mxu0 %v115
    %479 = vmatprep.subr.mxu0 %v120
    %480 = vmatpush1.msra.mxu0 %v119
    %481 = vmatprep.subr.mxu0 %v124
    %482 = vmatpush1.msra.mxu0 %v123
    %483 = vmatprep.subr.mxu0 %v128
    %484 = vmatpush1.msra.mxu0 %v127
    %485 = vmatprep.subr.mxu0 %v132
    %486 = vmatpush1.msra.mxu0 %v131
    %487 = vmatprep.subr.mxu0 %v136
    %488 = vmatpush1.msra.mxu0 %v135
    %489 = vmatprep.subr.mxu0 %v140
    %490 = vmatpush1.msra.mxu0 %v139
    %491 = vmatprep.subr.mxu0 %v144
    %492 = vmatpush1.msra.mxu0 %v143
    %493 = vmatprep.subr.mxu0 %v148
    %494 = vmatpush1.msra.mxu0 %v147
    %495 = vmatprep.subr.mxu0 %v152
    %496 = vmatpush1.msra.mxu0 %v151
    %497 = vmatprep.subr.mxu0 %v156
    %498 = vmatpush1.msra.mxu0 %v155
    %499 = vmatprep.subr.mxu0 %v160
    %500 = vmatpush1.msra.mxu0 %v159
    %501 = vmatprep.subr.mxu0 %v164
    %502 = vmatpush1.msra.mxu0 %v163
    %503 = vmatprep.subr.mxu0 %v168
    %504 = vmatpush1.msra.mxu0 %v167
    %505 = vmatprep.subr.mxu0 %v172
    %506 = vmatpush1.msra.mxu0 %v171
    %507 = vmatprep.subr.mxu0 %v176
    %508 = vmatpush1.msra.mxu0 %v175
    %509 = vmatprep.subr.mxu0 %v180
    %510 = vmatpush1.msra.mxu0 %v179
    %511 = vmatprep.subr.mxu0 %v184
    %512 = vmatpush1.msra.mxu0 %v183
    %513 = vmatprep.subr.mxu0 %v188
    %514 = vmatpush1.msra.mxu0 %v187
    %515 = vmatprep.subr.mxu0 %v192
    %516 = vmatpush1.msra.mxu0 %v191
    %517 = vmatprep.subr.mxu0 %v196
    %518 = vmatpush1.msra.mxu0 %v195
    %519 = vmatprep.mubr.f32.mxu0 %v60
    %520 = vmatmul.mubr.f32.gmra.mrb[0].mxu0 %v59
    %v521 = vpop.f32.mrb[0].mxu0
    %v522 = vadd.f32 0.0, %v521
    %v523 = vpop.f32.mrb[0].mxu0
    %v524 = vadd.f32 0.0, %v523
    %525 = vmatprep.mubr.f32.mxu0 %v66
    %526 = vmatmul.mubr.f32.gmra.mrb[0].mxu0 %v65
    %v527 = vpop.f32.mrb[0].mxu0
    %v528 = vadd.f32 0.0, %v527
    %v529 = vpop.f32.mrb[0].mxu0
    %v530 = vadd.f32 0.0, %v529
    %531 = vdwg.mxu0
    %532 = vmatprep.subr.mxu0 %v200
    %533 = vmatpush1.msra.mxu0 %v199
    %534 = vmatprep.subr.mxu0 %v204
    %535 = vmatpush1.msra.mxu0 %v203
    %536 = vmatprep.subr.mxu0 %v208
    %537 = vmatpush1.msra.mxu0 %v207
    %538 = vmatprep.subr.mxu0 %v212
    %539 = vmatpush1.msra.mxu0 %v211
    %540 = vmatprep.subr.mxu0 %v216
    %541 = vmatpush1.msra.mxu0 %v215
    %542 = vmatprep.subr.mxu0 %v220
    %543 = vmatpush1.msra.mxu0 %v219
    %544 = vmatprep.subr.mxu0 %v224
    %545 = vmatpush1.msra.mxu0 %v223
    %546 = vmatprep.subr.mxu0 %v228
    %547 = vmatpush1.msra.mxu0 %v227
    %548 = vmatprep.subr.mxu0 %v232
    %549 = vmatpush1.msra.mxu0 %v231
    %550 = vmatprep.subr.mxu0 %v236
    %551 = vmatpush1.msra.mxu0 %v235
    %552 = vmatprep.subr.mxu0 %v240
    %553 = vmatpush1.msra.mxu0 %v239
    %554 = vmatprep.subr.mxu0 %v244
    %555 = vmatpush1.msra.mxu0 %v243
    %556 = vmatprep.subr.mxu0 %v248
    %557 = vmatpush1.msra.mxu0 %v247
    %558 = vmatprep.subr.mxu0 %v252
    %559 = vmatpush1.msra.mxu0 %v251
    %560 = vmatprep.subr.mxu0 %v256
    %561 = vmatpush1.msra.mxu0 %v255
    %562 = vmatprep.subr.mxu0 %v260
    %563 = vmatpush1.msra.mxu0 %v259
    %564 = vmatprep.subr.mxu0 %v264
    %565 = vmatpush1.msra.mxu0 %v263
    %566 = vmatprep.subr.mxu0 %v268
    %567 = vmatpush1.msra.mxu0 %v267
    %568 = vmatprep.subr.mxu0 %v272
    %569 = vmatpush1.msra.mxu0 %v271
    %570 = vmatprep.subr.mxu0 %v276
    %571 = vmatpush1.msra.mxu0 %v275
    %572 = vmatprep.subr.mxu0 %v280
    %573 = vmatpush1.msra.mxu0 %v279
    %574 = vmatprep.subr.mxu0 %v284
    %575 = vmatpush1.msra.mxu0 %v283
    %576 = vmatprep.subr.mxu0 %v288
    %577 = vmatpush1.msra.mxu0 %v287
    %578 = vmatprep.subr.mxu0 %v292
    %579 = vmatpush1.msra.mxu0 %v291
    %580 = vmatprep.subr.mxu0 %v296
    %581 = vmatpush1.msra.mxu0 %v295
    %582 = vmatprep.subr.mxu0 %v300
    %583 = vmatpush1.msra.mxu0 %v299
    %584 = vmatprep.subr.mxu0 %v304
    %585 = vmatpush1.msra.mxu0 %v303
    %586 = vmatprep.subr.mxu0 %v308
    %587 = vmatpush1.msra.mxu0 %v307
    %588 = vmatprep.subr.mxu0 %v312
    %589 = vmatpush1.msra.mxu0 %v311
    %590 = vmatprep.subr.mxu0 %v316
    %591 = vmatpush1.msra.mxu0 %v315
    %592 = vmatprep.subr.mxu0 %v320
    %593 = vmatpush1.msra.mxu0 %v319
    %594 = vmatprep.subr.mxu0 %v324
    %595 = vmatpush1.msra.mxu0 %v323
    %596 = vmatprep.mubr.f32.mxu0 %v62
    %597 = vmatmul.mubr.f32.gmra.mrb[0].mxu0 %v61
    %v598 = vpop.f32.mrb[0].mxu0
    %v599 = vadd.f32 %v522, %v598
    %v600 = vpop.f32.mrb[0].mxu0
    %v601 = vadd.f32 %v524, %v600
    %602 = vmatprep.mubr.f32.mxu0 %v68
    %603 = vmatmul.mubr.f32.gmra.mrb[0].mxu0 %v67
    %v604 = vpop.f32.mrb[0].mxu0
    %v605 = vadd.f32 %v528, %v604
    %v606 = vpop.f32.mrb[0].mxu0
    %v607 = vadd.f32 %v530, %v606
    %608 = vdwg.mxu0
    %609 = vmatprep.subr.mxu0 %v328
    %610 = vmatpush1.msra.mxu0 %v327
    %611 = vmatprep.subr.mxu0 %v332
    %612 = vmatpush1.msra.mxu0 %v331
    %613 = vmatprep.subr.mxu0 %v336
    %614 = vmatpush1.msra.mxu0 %v335
    %615 = vmatprep.subr.mxu0 %v340
    %616 = vmatpush1.msra.mxu0 %v339
    %617 = vmatprep.subr.mxu0 %v344
    %618 = vmatpush1.msra.mxu0 %v343
    %619 = vmatprep.subr.mxu0 %v348
    %620 = vmatpush1.msra.mxu0 %v347
    %621 = vmatprep.subr.mxu0 %v352
    %622 = vmatpush1.msra.mxu0 %v351
    %623 = vmatprep.subr.mxu0 %v356
    %624 = vmatpush1.msra.mxu0 %v355
    %625 = vmatprep.subr.mxu0 %v360
    %626 = vmatpush1.msra.mxu0 %v359
    %627 = vmatprep.subr.mxu0 %v364
    %628 = vmatpush1.msra.mxu0 %v363
    %629 = vmatprep.subr.mxu0 %v368
    %630 = vmatpush1.msra.mxu0 %v367
    %631 = vmatprep.subr.mxu0 %v372
    %632 = vmatpush1.msra.mxu0 %v371
    %633 = vmatprep.subr.mxu0 %v376
    %634 = vmatpush1.msra.mxu0 %v375
    %635 = vmatprep.subr.mxu0 %v380
    %636 = vmatpush1.msra.mxu0 %v379
    %637 = vmatprep.subr.mxu0 %v384
    %638 = vmatpush1.msra.mxu0 %v383
    %639 = vmatprep.subr.mxu0 %v388
    %640 = vmatpush1.msra.mxu0 %v387
    %641 = vmatprep.subr.mxu0 %v392
    %642 = vmatpush1.msra.mxu0 %v391
    %643 = vmatprep.subr.mxu0 %v396
    %644 = vmatpush1.msra.mxu0 %v395
    %645 = vmatprep.subr.mxu0 %v400
    %646 = vmatpush1.msra.mxu0 %v399
    %647 = vmatprep.subr.mxu0 %v404
    %648 = vmatpush1.msra.mxu0 %v403
    %649 = vmatprep.subr.mxu0 %v408
    %650 = vmatpush1.msra.mxu0 %v407
    %651 = vmatprep.subr.mxu0 %v412
    %652 = vmatpush1.msra.mxu0 %v411
    %653 = vmatprep.subr.mxu0 %v416
    %654 = vmatpush1.msra.mxu0 %v415
    %655 = vmatprep.subr.mxu0 %v420
    %656 = vmatpush1.msra.mxu0 %v419
    %657 = vmatprep.subr.mxu0 %v424
    %658 = vmatpush1.msra.mxu0 %v423
    %659 = vmatprep.subr.mxu0 %v428
    %660 = vmatpush1.msra.mxu0 %v427
    %661 = vmatprep.subr.mxu0 %v432
    %662 = vmatpush1.msra.mxu0 %v431
    %663 = vmatprep.subr.mxu0 %v436
    %664 = vmatpush1.msra.mxu0 %v435
    %665 = vmatprep.subr.mxu0 %v440
    %666 = vmatpush1.msra.mxu0 %v439
    %667 = vmatprep.subr.mxu0 %v444
    %668 = vmatpush1.msra.mxu0 %v443
    %669 = vmatprep.subr.mxu0 %v448
    %670 = vmatpush1.msra.mxu0 %v447
    %671 = vmatprep.subr.mxu0 %v452
    %672 = vmatpush1.msra.mxu0 %v451
    %673 = vmatprep.mubr.f32.mxu0 %v64
    %674 = vmatmul.mubr.f32.gmra.mrb[0].mxu0 %v63
    %v675 = vpop.f32.mrb[0].mxu0
    %v676 = vadd.f32 %v599, %v675
    %v677 = vpop.f32.mrb[0].mxu0
    %v678 = vadd.f32 %v601, %v677
    %679 = vmatprep.mubr.f32.mxu0 %v70
    %680 = vmatmul.mubr.f32.gmra.mrb[0].mxu0 %v69
    %v681 = vpop.f32.mrb[0].mxu0
    %v682 = vadd.f32 %v605, %v681
    %v683 = vpop.f32.mrb[0].mxu0
    %v684 = vadd.f32 %v607, %v683
    %685 = vdwg.mxu0
    %686 = vmatprep.subr.mxu0 %v74
    %687 = vmatpush1.msra.mxu0 %v73
    %688 = vmatprep.subr.mxu0 %v78
    %689 = vmatpush1.msra.mxu0 %v77
    %690 = vmatprep.subr.mxu0 %v82
    %691 = vmatpush1.msra.mxu0 %v81
    %692 = vmatprep.subr.mxu0 %v86
    %693 = vmatpush1.msra.mxu0 %v85
    %694 = vmatprep.subr.mxu0 %v90
    %695 = vmatpush1.msra.mxu0 %v89
    %696 = vmatprep.subr.mxu0 %v94
    %697 = vmatpush1.msra.mxu0 %v93
    %698 = vmatprep.subr.mxu0 %v98
    %699 = vmatpush1.msra.mxu0 %v97
    %700 = vmatprep.subr.mxu0 %v102
    %701 = vmatpush1.msra.mxu0 %v101
    %702 = vmatprep.subr.mxu0 %v106
    %703 = vmatpush1.msra.mxu0 %v105
    %704 = vmatprep.subr.mxu0 %v110
    %705 = vmatpush1.msra.mxu0 %v109
    %706 = vmatprep.subr.mxu0 %v114
    %707 = vmatpush1.msra.mxu0 %v113
    %708 = vmatprep.subr.mxu0 %v118
    %709 = vmatpush1.msra.mxu0 %v117
    %710 = vmatprep.subr.mxu0 %v122
    %711 = vmatpush1.msra.mxu0 %v121
    %712 = vmatprep.subr.mxu0 %v126
    %713 = vmatpush1.msra.mxu0 %v125
    %714 = vmatprep.subr.mxu0 %v130
    %715 = vmatpush1.msra.mxu0 %v129
    %716 = vmatprep.subr.mxu0 %v134
    %717 = vmatpush1.msra.mxu0 %v133
    %718 = vmatprep.subr.mxu0 %v138
    %719 = vmatpush1.msra.mxu0 %v137
    %720 = vmatprep.subr.mxu0 %v142
    %721 = vmatpush1.msra.mxu0 %v141
    %722 = vmatprep.subr.mxu0 %v146
    %723 = vmatpush1.msra.mxu0 %v145
    %724 = vmatprep.subr.mxu0 %v150
    %725 = vmatpush1.msra.mxu0 %v149
    %726 = vmatprep.subr.mxu0 %v154
    %727 = vmatpush1.msra.mxu0 %v153
    %728 = vmatprep.subr.mxu0 %v158
    %729 = vmatpush1.msra.mxu0 %v157
    %730 = vmatprep.subr.mxu0 %v162
    %731 = vmatpush1.msra.mxu0 %v161
    %732 = vmatprep.subr.mxu0 %v166
    %733 = vmatpush1.msra.mxu0 %v165
    %734 = vmatprep.subr.mxu0 %v170
    %735 = vmatpush1.msra.mxu0 %v169
    %736 = vmatprep.subr.mxu0 %v174
    %737 = vmatpush1.msra.mxu0 %v173
    %738 = vmatprep.subr.mxu0 %v178
    %739 = vmatpush1.msra.mxu0 %v177
    %740 = vmatprep.subr.mxu0 %v182
    %741 = vmatpush1.msra.mxu0 %v181
    %742 = vmatprep.subr.mxu0 %v186
    %743 = vmatpush1.msra.mxu0 %v185
    %744 = vmatprep.subr.mxu0 %v190
    %745 = vmatpush1.msra.mxu0 %v189
    %746 = vmatprep.subr.mxu0 %v194
    %747 = vmatpush1.msra.mxu0 %v193
    %748 = vmatprep.subr.mxu0 %v198
    %749 = vmatpush1.msra.mxu0 %v197
    %750 = vmatprep.mubr.f32.mxu0 %v60
    %751 = vmatmul.mubr.f32.gmra.mrb[0].mxu0 %v59
    %v752 = vpop.f32.mrb[0].mxu0
    %v753 = vadd.f32 0.0, %v752
    %v754 = vpop.f32.mrb[0].mxu0
    %v755 = vadd.f32 0.0, %v754
    %756 = vmatprep.mubr.f32.mxu0 %v66
    %757 = vmatmul.mubr.f32.gmra.mrb[0].mxu0 %v65
    %v758 = vpop.f32.mrb[0].mxu0
    %v759 = vadd.f32 0.0, %v758
    %v760 = vpop.f32.mrb[0].mxu0
    %v761 = vadd.f32 0.0, %v760
    %762 = vdwg.mxu0
    %763 = vmatprep.subr.mxu0 %v202
    %764 = vmatpush1.msra.mxu0 %v201
    %765 = vmatprep.subr.mxu0 %v206
    %766 = vmatpush1.msra.mxu0 %v205
    %767 = vmatprep.subr.mxu0 %v210
    %768 = vmatpush1.msra.mxu0 %v209
    %769 = vmatprep.subr.mxu0 %v214
    %770 = vmatpush1.msra.mxu0 %v213
    %771 = vmatprep.subr.mxu0 %v218
    %772 = vmatpush1.msra.mxu0 %v217
    %773 = vmatprep.subr.mxu0 %v222
    %774 = vmatpush1.msra.mxu0 %v221
    %775 = vmatprep.subr.mxu0 %v226
    %776 = vmatpush1.msra.mxu0 %v225
    %777 = vmatprep.subr.mxu0 %v230
    %778 = vmatpush1.msra.mxu0 %v229
    %779 = vmatprep.subr.mxu0 %v234
    %780 = vmatpush1.msra.mxu0 %v233
    %781 = vmatprep.subr.mxu0 %v238
    %782 = vmatpush1.msra.mxu0 %v237
    %783 = vmatprep.subr.mxu0 %v242
    %784 = vmatpush1.msra.mxu0 %v241
    %785 = vmatprep.subr.mxu0 %v246
    %786 = vmatpush1.msra.mxu0 %v245
    %787 = vmatprep.subr.mxu0 %v250
    %788 = vmatpush1.msra.mxu0 %v249
    %789 = vmatprep.subr.mxu0 %v254
    %790 = vmatpush1.msra.mxu0 %v253
    %791 = vmatprep.subr.mxu0 %v258
    %792 = vmatpush1.msra.mxu0 %v257
    %793 = vmatprep.subr.mxu0 %v262
    %794 = vmatpush1.msra.mxu0 %v261
    %795 = vmatprep.subr.mxu0 %v266
    %796 = vmatpush1.msra.mxu0 %v265
    %797 = vmatprep.subr.mxu0 %v270
    %798 = vmatpush1.msra.mxu0 %v269
    %799 = vmatprep.subr.mxu0 %v274
    %800 = vmatpush1.msra.mxu0 %v273
    %801 = vmatprep.subr.mxu0 %v278
    %802 = vmatpush1.msra.mxu0 %v277
    %803 = vmatprep.subr.mxu0 %v282
    %804 = vmatpush1.msra.mxu0 %v281
    %805 = vmatprep.subr.mxu0 %v286
    %806 = vmatpush1.msra.mxu0 %v285
    %807 = vmatprep.subr.mxu0 %v290
    %808 = vmatpush1.msra.mxu0 %v289
    %809 = vmatprep.subr.mxu0 %v294
    %810 = vmatpush1.msra.mxu0 %v293
    %811 = vmatprep.subr.mxu0 %v298
    %812 = vmatpush1.msra.mxu0 %v297
    %813 = vmatprep.subr.mxu0 %v302
    %814 = vmatpush1.msra.mxu0 %v301
    %815 = vmatprep.subr.mxu0 %v306
    %816 = vmatpush1.msra.mxu0 %v305
    %817 = vmatprep.subr.mxu0 %v310
    %818 = vmatpush1.msra.mxu0 %v309
    %819 = vmatprep.subr.mxu0 %v314
    %820 = vmatpush1.msra.mxu0 %v313
    %821 = vmatprep.subr.mxu0 %v318
    %822 = vmatpush1.msra.mxu0 %v317
    %823 = vmatprep.subr.mxu0 %v322
    %824 = vmatpush1.msra.mxu0 %v321
    %825 = vmatprep.subr.mxu0 %v326
    %826 = vmatpush1.msra.mxu0 %v325
    %827 = vmatprep.mubr.f32.mxu0 %v62
    %828 = vmatmul.mubr.f32.gmra.mrb[0].mxu0 %v61
    %v829 = vpop.f32.mrb[0].mxu0
    %v830 = vadd.f32 %v753, %v829
    %v831 = vpop.f32.mrb[0].mxu0
    %v832 = vadd.f32 %v755, %v831
    %833 = vmatprep.mubr.f32.mxu0 %v68
    %834 = vmatmul.mubr.f32.gmra.mrb[0].mxu0 %v67
    %v835 = vpop.f32.mrb[0].mxu0
    %v836 = vadd.f32 %v759, %v835
    %v837 = vpop.f32.mrb[0].mxu0
    %v838 = vadd.f32 %v761, %v837
    %839 = vdwg.mxu0
    %840 = vmatprep.subr.mxu0 %v330
    %841 = vmatpush1.msra.mxu0 %v329
    %842 = vmatprep.subr.mxu0 %v334
    %843 = vmatpush1.msra.mxu0 %v333
    %844 = vmatprep.subr.mxu0 %v338
    %845 = vmatpush1.msra.mxu0 %v337
    %846 = vmatprep.subr.mxu0 %v342
    %847 = vmatpush1.msra.mxu0 %v341
    %848 = vmatprep.subr.mxu0 %v346
    %849 = vmatpush1.msra.mxu0 %v345
    %850 = vmatprep.subr.mxu0 %v350
    %851 = vmatpush1.msra.mxu0 %v349
    %852 = vmatprep.subr.mxu0 %v354
    %853 = vmatpush1.msra.mxu0 %v353
    %854 = vmatprep.subr.mxu0 %v358
    %855 = vmatpush1.msra.mxu0 %v357
    %856 = vmatprep.subr.mxu0 %v362
    %857 = vmatpush1.msra.mxu0 %v361
    %858 = vmatprep.subr.mxu0 %v366
    %859 = vmatpush1.msra.mxu0 %v365
    %860 = vmatprep.subr.mxu0 %v370
    %861 = vmatpush1.msra.mxu0 %v369
    %862 = vmatprep.subr.mxu0 %v374
    %863 = vmatpush1.msra.mxu0 %v373
    %864 = vmatprep.subr.mxu0 %v378
    %865 = vmatpush1.msra.mxu0 %v377
    %866 = vmatprep.subr.mxu0 %v382
    %867 = vmatpush1.msra.mxu0 %v381
    %868 = vmatprep.subr.mxu0 %v386
    %869 = vmatpush1.msra.mxu0 %v385
    %870 = vmatprep.subr.mxu0 %v390
    %871 = vmatpush1.msra.mxu0 %v389
    %872 = vmatprep.subr.mxu0 %v394
    %873 = vmatpush1.msra.mxu0 %v393
    %874 = vmatprep.subr.mxu0 %v398
    %875 = vmatpush1.msra.mxu0 %v397
    %876 = vmatprep.subr.mxu0 %v402
    %877 = vmatpush1.msra.mxu0 %v401
    %878 = vmatprep.subr.mxu0 %v406
    %879 = vmatpush1.msra.mxu0 %v405
    %880 = vmatprep.subr.mxu0 %v410
    %881 = vmatpush1.msra.mxu0 %v409
    %882 = vmatprep.subr.mxu0 %v414
    %883 = vmatpush1.msra.mxu0 %v413
    %884 = vmatprep.subr.mxu0 %v418
    %885 = vmatpush1.msra.mxu0 %v417
    %886 = vmatprep.subr.mxu0 %v422
    %887 = vmatpush1.msra.mxu0 %v421
    %888 = vmatprep.subr.mxu0 %v426
    %889 = vmatpush1.msra.mxu0 %v425
    %890 = vmatprep.subr.mxu0 %v430
    %891 = vmatpush1.msra.mxu0 %v429
    %892 = vmatprep.subr.mxu0 %v434
    %893 = vmatpush1.msra.mxu0 %v433
    %894 = vmatprep.subr.mxu0 %v438
    %895 = vmatpush1.msra.mxu0 %v437
    %896 = vmatprep.subr.mxu0 %v442
    %897 = vmatpush1.msra.mxu0 %v441
    %898 = vmatprep.subr.mxu0 %v446
    %899 = vmatpush1.msra.mxu0 %v445
    %900 = vmatprep.subr.mxu0 %v450
    %901 = vmatpush1.msra.mxu0 %v449
    %902 = vmatprep.subr.mxu0 %v454
    %903 = vmatpush1.msra.mxu0 %v453
    %904 = vmatprep.mubr.f32.mxu0 %v64
    %905 = vmatmul.mubr.f32.gmra.mrb[0].mxu0 %v63
    %v906 = vpop.f32.mrb[0].mxu0
    %v907 = vadd.f32 %v830, %v906
    %v908 = vpop.f32.mrb[0].mxu0
    %v909 = vadd.f32 %v832, %v908
    %910 = vmatprep.mubr.f32.mxu0 %v70
    %911 = vmatmul.mubr.f32.gmra.mrb[0].mxu0 %v69
    %v912 = vpop.f32.mrb[0].mxu0
    %v913 = vadd.f32 %v836, %v912
    %v914 = vpop.f32.mrb[0].mxu0
    %v915 = vadd.f32 %v838, %v914
    %916 = vdwg.mxu0
    %917 = vst [vmem:[%s4] sm:$0xff] %v676
    %918 = vst [vmem:[%s4 + $0x8] sm:$0xff] %v678
    %919 = vst [vmem:[%s4 + $0x10] sm:$0xff] %v907
    %920 = vst [vmem:[%s4 + $0x18] sm:$0xff] %v909
    %921 = vst [vmem:[%s4 + $0x20] sm:$0xff] %v682
    %922 = vst [vmem:[%s4 + $0x28] sm:$0xff] %v684
    %923 = vst [vmem:[%s4 + $0x30] sm:$0xff] %v913
    %924 = vst [vmem:[%s4 + $0x38] sm:$0xff] %v915
    %v925 = vpack.c.bf16 %v65, %v59
    %v926 = vpack.c.bf16 %v66, %v60
    %v927 = vpack.c.bf16 %v67, %v61
    %v928 = vpack.c.bf16 %v68, %v62
    %v929 = vpack.c.bf16 %v69, %v63
    %v930 = vpack.c.bf16 %v70, %v64
    %v931 = vld [vmem:[#allocation4] sm:$0xf]
    %v932 = vld [vmem:[#allocation4 + $0x4] sm:$0xf]
    %v933 = vld [vmem:[#allocation4 + $0x8] sm:$0xf]
    %v934 = vld [vmem:[#allocation4 + $0xc] sm:$0xf]
    %v935 = vld [vmem:[#allocation4 + $0x10] sm:$0xf]
    %v936 = vld [vmem:[#allocation4 + $0x14] sm:$0xf]
    %v937 = vld [vmem:[#allocation4 + $0x18] sm:$0xf]
    %v938 = vld [vmem:[#allocation4 + $0x1c] sm:$0xf]
    %v939 = vld [vmem:[#allocation4 + $0x20] sm:$0xf]
    %v940 = vld [vmem:[#allocation4 + $0x24] sm:$0xf]
    %v941 = vld [vmem:[#allocation4 + $0x28] sm:$0xf]
    %v942 = vld [vmem:[#allocation4 + $0x2c] sm:$0xf]
    %v943 = vld [vmem:[#allocation4 + $0x30] sm:$0xf]
    %v944 = vld [vmem:[#allocation4 + $0x34] sm:$0xf]
    %v945 = vld [vmem:[#allocation4 + $0x38] sm:$0xf]
    %v946 = vld [vmem:[#allocation4 + $0x3c] sm:$0xf]
    %v947 = vld [vmem:[#allocation4 + $0x40] sm:$0xf]
    %v948 = vld [vmem:[#allocation4 + $0x44] sm:$0xf]
    %v949 = vld [vmem:[#allocation4 + $0x48] sm:$0xf]
    %v950 = vld [vmem:[#allocation4 + $0x4c] sm:$0xf]
    %v951 = vld [vmem:[#allocation4 + $0x50] sm:$0xf]
    %v952 = vld [vmem:[#allocation4 + $0x54] sm:$0xf]
    %v953 = vld [vmem:[#allocation4 + $0x58] sm:$0xf]
    %v954 = vld [vmem:[#allocation4 + $0x5c] sm:$0xf]
    %v955 = vld [vmem:[#allocation4 + $0x60] sm:$0xf]
    %v956 = vld [vmem:[#allocation4 + $0x64] sm:$0xf]
    %v957 = vld [vmem:[#allocation4 + $0x68] sm:$0xf]
    %v958 = vld [vmem:[#allocation4 + $0x6c] sm:$0xf]
    %v959 = vld [vmem:[#allocation4 + $0x70] sm:$0xf]
    %v960 = vld [vmem:[#allocation4 + $0x74] sm:$0xf]
    %v961 = vld [vmem:[#allocation4 + $0x78] sm:$0xf]
    %v962 = vld [vmem:[#allocation4 + $0x7c] sm:$0xf]
    %v963 = vld [vmem:[#allocation4 + $0x80] sm:$0xf]
    %v964 = vld [vmem:[#allocation4 + $0x84] sm:$0xf]
    %v965 = vld [vmem:[#allocation4 + $0x88] sm:$0xf]
    %v966 = vld [vmem:[#allocation4 + $0x8c] sm:$0xf]
    %v967 = vld [vmem:[#allocation4 + $0x90] sm:$0xf]
    %v968 = vld [vmem:[#allocation4 + $0x94] sm:$0xf]
    %v969 = vld [vmem:[#allocation4 + $0x98] sm:$0xf]
    %v970 = vld [vmem:[#allocation4 + $0x9c] sm:$0xf]
    %v971 = vld [vmem:[#allocation4 + $0xa0] sm:$0xf]
    %v972 = vld [vmem:[#allocation4 + $0xa4] sm:$0xf]
    %v973 = vld [vmem:[#allocation4 + $0xa8] sm:$0xf]
    %v974 = vld [vmem:[#allocation4 + $0xac] sm:$0xf]
    %v975 = vld [vmem:[#allocation4 + $0xb0] sm:$0xf]
    %v976 = vld [vmem:[#allocation4 + $0xb4] sm:$0xf]
    %v977 = vld [vmem:[#allocation4 + $0xb8] sm:$0xf]
    %v978 = vld [vmem:[#allocation4 + $0xbc] sm:$0xf]
    %v979 = vld [vmem:[#allocation4 + $0xc0] sm:$0xf]
    %v980 = vld [vmem:[#allocation4 + $0xc4] sm:$0xf]
    %v981 = vld [vmem:[#allocation4 + $0xc8] sm:$0xf]
    %v982 = vld [vmem:[#allocation4 + $0xcc] sm:$0xf]
    %v983 = vld [vmem:[#allocation4 + $0xd0] sm:$0xf]
    %v984 = vld [vmem:[#allocation4 + $0xd4] sm:$0xf]
    %v985 = vld [vmem:[#allocation4 + $0xd8] sm:$0xf]
    %v986 = vld [vmem:[#allocation4 + $0xdc] sm:$0xf]
    %v987 = vld [vmem:[#allocation4 + $0xe0] sm:$0xf]
    %v988 = vld [vmem:[#allocation4 + $0xe4] sm:$0xf]
    %v989 = vld [vmem:[#allocation4 + $0xe8] sm:$0xf]
    %v990 = vld [vmem:[#allocation4 + $0xec] sm:$0xf]
    %v991 = vld [vmem:[#allocation4 + $0xf0] sm:$0xf]
    %v992 = vld [vmem:[#allocation4 + $0xf4] sm:$0xf]
    %v993 = vld [vmem:[#allocation4 + $0xf8] sm:$0xf]
    %v994 = vld [vmem:[#allocation4 + $0xfc] sm:$0xf]
    %v995 = vld [vmem:[#allocation4 + $0x100] sm:$0xf]
    %v996 = vld [vmem:[#allocation4 + $0x104] sm:$0xf]
    %v997 = vld [vmem:[#allocation4 + $0x108] sm:$0xf]
    %v998 = vld [vmem:[#allocation4 + $0x10c] sm:$0xf]
    %v999 = vld [vmem:[#allocation4 + $0x110] sm:$0xf]
    %v1000 = vld [vmem:[#allocation4 + $0x114] sm:$0xf]
    %v1001 = vld [vmem:[#allocation4 + $0x118] sm:$0xf]
    %v1002 = vld [vmem:[#allocation4 + $0x11c] sm:$0xf]
    %v1003 = vld [vmem:[#allocation4 + $0x120] sm:$0xf]
    %v1004 = vld [vmem:[#allocation4 + $0x124] sm:$0xf]
    %v1005 = vld [vmem:[#allocation4 + $0x128] sm:$0xf]
    %v1006 = vld [vmem:[#allocation4 + $0x12c] sm:$0xf]
    %v1007 = vld [vmem:[#allocation4 + $0x130] sm:$0xf]
    %v1008 = vld [vmem:[#allocation4 + $0x134] sm:$0xf]
    %v1009 = vld [vmem:[#allocation4 + $0x138] sm:$0xf]
    %v1010 = vld [vmem:[#allocation4 + $0x13c] sm:$0xf]
    %v1011 = vld [vmem:[#allocation4 + $0x140] sm:$0xf]
    %v1012 = vld [vmem:[#allocation4 + $0x144] sm:$0xf]
    %v1013 = vld [vmem:[#allocation4 + $0x148] sm:$0xf]
    %v1014 = vld [vmem:[#allocation4 + $0x14c] sm:$0xf]
    %v1015 = vld [vmem:[#allocation4 + $0x150] sm:$0xf]
    %v1016 = vld [vmem:[#allocation4 + $0x154] sm:$0xf]
    %v1017 = vld [vmem:[#allocation4 + $0x158] sm:$0xf]
    %v1018 = vld [vmem:[#allocation4 + $0x15c] sm:$0xf]
    %v1019 = vld [vmem:[#allocation4 + $0x160] sm:$0xf]
    %v1020 = vld [vmem:[#allocation4 + $0x164] sm:$0xf]
    %v1021 = vld [vmem:[#allocation4 + $0x168] sm:$0xf]
    %v1022 = vld [vmem:[#allocation4 + $0x16c] sm:$0xf]
    %v1023 = vld [vmem:[#allocation4 + $0x170] sm:$0xf]
    %v1024 = vld [vmem:[#allocation4 + $0x174] sm:$0xf]
    %v1025 = vld [vmem:[#allocation4 + $0x178] sm:$0xf]
    %v1026 = vld [vmem:[#allocation4 + $0x17c] sm:$0xf]
    %v1027 = vld [vmem:[#allocation6] sm:$0x1]
    %v1029 = vlaneseq
    %v1030 = vshrl.u32 %v1029, 7
    %v1031 = vsub.s32 0, %v1030
    %v1032 = vrot.slane %v1027, %v1031
    %v1130 = vunpack.c.l.b16 %v931
    %v1131 = vunpack.c.l.b16 %v932
    %v1132 = vunpack.c.l.b16 %v933
    %v1133 = vunpack.c.l.b16 %v934
    %v1134 = vunpack.c.l.b16 %v935
    %v1135 = vunpack.c.l.b16 %v936
    %v1136 = vunpack.c.l.b16 %v937
    %v1137 = vunpack.c.l.b16 %v938
    %v1138 = vunpack.c.l.b16 %v939
    %v1139 = vunpack.c.l.b16 %v940
    %v1140 = vunpack.c.l.b16 %v941
    %v1141 = vunpack.c.l.b16 %v942
    %v1142 = vunpack.c.l.b16 %v943
    %v1143 = vunpack.c.l.b16 %v944
    %v1144 = vunpack.c.l.b16 %v945
    %v1145 = vunpack.c.l.b16 %v946
    %v1146 = vunpack.c.l.b16 %v947
    %v1147 = vunpack.c.l.b16 %v948
    %v1148 = vunpack.c.l.b16 %v949
    %v1149 = vunpack.c.l.b16 %v950
    %v1150 = vunpack.c.l.b16 %v951
    %v1151 = vunpack.c.l.b16 %v952
    %v1152 = vunpack.c.l.b16 %v953
    %v1153 = vunpack.c.l.b16 %v954
    %v1154 = vunpack.c.l.b16 %v955
    %v1155 = vunpack.c.l.b16 %v956
    %v1156 = vunpack.c.l.b16 %v957
    %v1157 = vunpack.c.l.b16 %v958
    %v1158 = vunpack.c.l.b16 %v959
    %v1159 = vunpack.c.l.b16 %v960
    %v1160 = vunpack.c.l.b16 %v961
    %v1161 = vunpack.c.l.b16 %v962
    %v1162 = vunpack.c.l.b16 %v963
    %v1163 = vunpack.c.l.b16 %v964
    %v1164 = vunpack.c.l.b16 %v965
    %v1165 = vunpack.c.l.b16 %v966
    %v1166 = vunpack.c.l.b16 %v967
    %v1167 = vunpack.c.l.b16 %v968
    %v1168 = vunpack.c.l.b16 %v969
    %v1169 = vunpack.c.l.b16 %v970
    %v1170 = vunpack.c.l.b16 %v971
    %v1171 = vunpack.c.l.b16 %v972
    %v1172 = vunpack.c.l.b16 %v973
    %v1173 = vunpack.c.l.b16 %v974
    %v1174 = vunpack.c.l.b16 %v975
    %v1175 = vunpack.c.l.b16 %v976
    %v1176 = vunpack.c.l.b16 %v977
    %v1177 = vunpack.c.l.b16 %v978
    %v1178 = vunpack.c.l.b16 %v979
    %v1179 = vunpack.c.l.b16 %v980
    %v1180 = vunpack.c.l.b16 %v981
    %v1181 = vunpack.c.l.b16 %v982
    %v1182 = vunpack.c.l.b16 %v983
    %v1183 = vunpack.c.l.b16 %v984
    %v1184 = vunpack.c.l.b16 %v985
    %v1185 = vunpack.c.l.b16 %v986
    %v1186 = vunpack.c.l.b16 %v987
    %v1187 = vunpack.c.l.b16 %v988
    %v1188 = vunpack.c.l.b16 %v989
    %v1189 = vunpack.c.l.b16 %v990
    %v1190 = vunpack.c.l.b16 %v991
    %v1191 = vunpack.c.l.b16 %v992
    %v1192 = vunpack.c.l.b16 %v993
    %v1193 = vunpack.c.l.b16 %v994
    %v1194 = vunpack.c.l.b16 %v995
    %v1195 = vunpack.c.l.b16 %v996
    %v1196 = vunpack.c.l.b16 %v997
    %v1197 = vunpack.c.l.b16 %v998
    %v1198 = vunpack.c.l.b16 %v999
    %v1199 = vunpack.c.l.b16 %v1000
    %v1200 = vunpack.c.l.b16 %v1001
    %v1201 = vunpack.c.l.b16 %v1002
    %v1202 = vunpack.c.l.b16 %v1003
    %v1203 = vunpack.c.l.b16 %v1004
    %v1204 = vunpack.c.l.b16 %v1005
    %v1205 = vunpack.c.l.b16 %v1006
    %v1206 = vunpack.c.l.b16 %v1007
    %v1207 = vunpack.c.l.b16 %v1008
    %v1208 = vunpack.c.l.b16 %v1009
    %v1209 = vunpack.c.l.b16 %v1010
    %v1210 = vunpack.c.l.b16 %v1011
    %v1211 = vunpack.c.l.b16 %v1012
    %v1212 = vunpack.c.l.b16 %v1013
    %v1213 = vunpack.c.l.b16 %v1014
    %v1214 = vunpack.c.l.b16 %v1015
    %v1215 = vunpack.c.l.b16 %v1016
    %v1216 = vunpack.c.l.b16 %v1017
    %v1217 = vunpack.c.l.b16 %v1018
    %v1218 = vunpack.c.l.b16 %v1019
    %v1219 = vunpack.c.l.b16 %v1020
    %v1220 = vunpack.c.l.b16 %v1021
    %v1221 = vunpack.c.l.b16 %v1022
    %v1222 = vunpack.c.l.b16 %v1023
    %v1223 = vunpack.c.l.b16 %v1024
    %v1224 = vunpack.c.l.b16 %v1025
    %v1225 = vunpack.c.l.b16 %v1026
    %v1226 = vpack.c.b16 %v1131, %v1130
    %v1227 = vpack.c.b16 %v1133, %v1132
    %v1228 = vpack.c.b16 %v1135, %v1134
    %v1229 = vpack.c.b16 %v1137, %v1136
    %v1230 = vpack.c.b16 %v1139, %v1138
    %v1231 = vpack.c.b16 %v1141, %v1140
    %v1232 = vpack.c.b16 %v1143, %v1142
    %v1233 = vpack.c.b16 %v1145, %v1144
    %v1234 = vpack.c.b16 %v1147, %v1146
    %v1235 = vpack.c.b16 %v1149, %v1148
    %v1236 = vpack.c.b16 %v1151, %v1150
    %v1237 = vpack.c.b16 %v1153, %v1152
    %v1238 = vpack.c.b16 %v1155, %v1154
    %v1239 = vpack.c.b16 %v1157, %v1156
    %v1240 = vpack.c.b16 %v1159, %v1158
    %v1241 = vpack.c.b16 %v1161, %v1160
    %v1242 = vpack.c.b16 %v1163, %v1162
    %v1243 = vpack.c.b16 %v1165, %v1164
    %v1244 = vpack.c.b16 %v1167, %v1166
    %v1245 = vpack.c.b16 %v1169, %v1168
    %v1246 = vpack.c.b16 %v1171, %v1170
    %v1247 = vpack.c.b16 %v1173, %v1172
    %v1248 = vpack.c.b16 %v1175, %v1174
    %v1249 = vpack.c.b16 %v1177, %v1176
    %v1250 = vpack.c.b16 %v1179, %v1178
    %v1251 = vpack.c.b16 %v1181, %v1180
    %v1252 = vpack.c.b16 %v1183, %v1182
    %v1253 = vpack.c.b16 %v1185, %v1184
    %v1254 = vpack.c.b16 %v1187, %v1186
    %v1255 = vpack.c.b16 %v1189, %v1188
    %v1256 = vpack.c.b16 %v1191, %v1190
    %v1257 = vpack.c.b16 %v1193, %v1192
    %v1258 = vpack.c.b16 %v1195, %v1194
    %v1259 = vpack.c.b16 %v1197, %v1196
    %v1260 = vpack.c.b16 %v1199, %v1198
    %v1261 = vpack.c.b16 %v1201, %v1200
    %v1262 = vpack.c.b16 %v1203, %v1202
    %v1263 = vpack.c.b16 %v1205, %v1204
    %v1264 = vpack.c.b16 %v1207, %v1206
    %v1265 = vpack.c.b16 %v1209, %v1208
    %v1266 = vpack.c.b16 %v1211, %v1210
    %v1267 = vpack.c.b16 %v1213, %v1212
    %v1268 = vpack.c.b16 %v1215, %v1214
    %v1269 = vpack.c.b16 %v1217, %v1216
    %v1270 = vpack.c.b16 %v1219, %v1218
    %v1271 = vpack.c.b16 %v1221, %v1220
    %v1272 = vpack.c.b16 %v1223, %v1222
    %v1273 = vpack.c.b16 %v1225, %v1224
    %1322 = vmatprep.subr.bf16.mxu0 0
    %1323 = vmatpush1.bf16.msra.mxu0 %v1226
    %1324 = vmatprep.subr.bf16.mxu0 0
    %1325 = vmatpush1.bf16.msra.mxu0 %v1227
    %1326 = vmatprep.subr.bf16.mxu0 0
    %1327 = vmatpush1.bf16.msra.mxu0 %v1228
    %1328 = vmatprep.subr.bf16.mxu0 0
    %1329 = vmatpush1.bf16.msra.mxu0 %v1229
    %1330 = vmatprep.subr.bf16.mxu0 0
    %1331 = vmatpush1.bf16.msra.mxu0 %v1230
    %1332 = vmatprep.subr.bf16.mxu0 0
    %1333 = vmatpush1.bf16.msra.mxu0 %v1231
    %1334 = vmatprep.subr.bf16.mxu0 0
    %1335 = vmatpush1.bf16.msra.mxu0 %v1232
    %1336 = vmatprep.subr.bf16.mxu0 0
    %1337 = vmatpush1.bf16.msra.mxu0 %v1233
    %1338 = vmatprep.subr.bf16.mxu0 0
    %1339 = vmatpush1.bf16.msra.mxu0 %v1234
    %1340 = vmatprep.subr.bf16.mxu0 0
    %1341 = vmatpush1.bf16.msra.mxu0 %v1235
    %1342 = vmatprep.subr.bf16.mxu0 0
    %1343 = vmatpush1.bf16.msra.mxu0 %v1236
    %1344 = vmatprep.subr.bf16.mxu0 0
    %1345 = vmatpush1.bf16.msra.mxu0 %v1237
    %1346 = vmatprep.subr.bf16.mxu0 0
    %1347 = vmatpush1.bf16.msra.mxu0 %v1238
    %1348 = vmatprep.subr.bf16.mxu0 0
    %1349 = vmatpush1.bf16.msra.mxu0 %v1239
    %1350 = vmatprep.subr.bf16.mxu0 0
    %1351 = vmatpush1.bf16.msra.mxu0 %v1240
    %1352 = vmatprep.subr.bf16.mxu0 0
    %1353 = vmatpush1.bf16.msra.mxu0 %v1241
    %1354 = vmatprep.mubr.bf16.mxu0 %v926
    %1355 = vmatmul.mubr.bf16.gmra.mrb[0].mxu0 %v925
    %v1356 = vpop.f32.mrb[0].mxu0
    %v1357 = vadd.f32 %v1032, %v1356
    %v1358 = vpop.f32.mrb[0].mxu0
    %v1359 = vpop.f32.mrb[0].mxu0
    %v1360 = vadd.f32 %v1032, %v1359
    %v1361 = vpop.f32.mrb[0].mxu0
    %1362 = vdwg.mxu0
    %1363 = vmatprep.subr.bf16.mxu0 0
    %1364 = vmatpush1.bf16.msra.mxu0 %v1242
    %1365 = vmatprep.subr.bf16.mxu0 0
    %1366 = vmatpush1.bf16.msra.mxu0 %v1243
    %1367 = vmatprep.subr.bf16.mxu0 0
    %1368 = vmatpush1.bf16.msra.mxu0 %v1244
    %1369 = vmatprep.subr.bf16.mxu0 0
    %1370 = vmatpush1.bf16.msra.mxu0 %v1245
    %1371 = vmatprep.subr.bf16.mxu0 0
    %1372 = vmatpush1.bf16.msra.mxu0 %v1246
    %1373 = vmatprep.subr.bf16.mxu0 0
    %1374 = vmatpush1.bf16.msra.mxu0 %v1247
    %1375 = vmatprep.subr.bf16.mxu0 0
    %1376 = vmatpush1.bf16.msra.mxu0 %v1248
    %1377 = vmatprep.subr.bf16.mxu0 0
    %1378 = vmatpush1.bf16.msra.mxu0 %v1249
    %1379 = vmatprep.subr.bf16.mxu0 0
    %1380 = vmatpush1.bf16.msra.mxu0 %v1250
    %1381 = vmatprep.subr.bf16.mxu0 0
    %1382 = vmatpush1.bf16.msra.mxu0 %v1251
    %1383 = vmatprep.subr.bf16.mxu0 0
    %1384 = vmatpush1.bf16.msra.mxu0 %v1252
    %1385 = vmatprep.subr.bf16.mxu0 0
    %1386 = vmatpush1.bf16.msra.mxu0 %v1253
    %1387 = vmatprep.subr.bf16.mxu0 0
    %1388 = vmatpush1.bf16.msra.mxu0 %v1254
    %1389 = vmatprep.subr.bf16.mxu0 0
    %1390 = vmatpush1.bf16.msra.mxu0 %v1255
    %1391 = vmatprep.subr.bf16.mxu0 0
    %1392 = vmatpush1.bf16.msra.mxu0 %v1256
    %1393 = vmatprep.subr.bf16.mxu0 0
    %1394 = vmatpush1.bf16.msra.mxu0 %v1257
    %1395 = vmatprep.mubr.bf16.mxu0 %v928
    %1396 = vmatmul.mubr.bf16.gmra.mrb[0].mxu0 %v927
    %v1397 = vpop.f32.mrb[0].mxu0
    %v1398 = vadd.f32 %v1357, %v1397
    %v1399 = vpop.f32.mrb[0].mxu0
    %v1400 = vpop.f32.mrb[0].mxu0
    %v1401 = vadd.f32 %v1360, %v1400
    %v1402 = vpop.f32.mrb[0].mxu0
    %1403 = vdwg.mxu0
    %1404 = vmatprep.subr.bf16.mxu0 0
    %1405 = vmatpush1.bf16.msra.mxu0 %v1258
    %1406 = vmatprep.subr.bf16.mxu0 0
    %1407 = vmatpush1.bf16.msra.mxu0 %v1259
    %1408 = vmatprep.subr.bf16.mxu0 0
    %1409 = vmatpush1.bf16.msra.mxu0 %v1260
    %1410 = vmatprep.subr.bf16.mxu0 0
    %1411 = vmatpush1.bf16.msra.mxu0 %v1261
    %1412 = vmatprep.subr.bf16.mxu0 0
    %1413 = vmatpush1.bf16.msra.mxu0 %v1262
    %1414 = vmatprep.subr.bf16.mxu0 0
    %1415 = vmatpush1.bf16.msra.mxu0 %v1263
    %1416 = vmatprep.subr.bf16.mxu0 0
    %1417 = vmatpush1.bf16.msra.mxu0 %v1264
    %1418 = vmatprep.subr.bf16.mxu0 0
    %1419 = vmatpush1.bf16.msra.mxu0 %v1265
    %1420 = vmatprep.subr.bf16.mxu0 0
    %1421 = vmatpush1.bf16.msra.mxu0 %v1266
    %1422 = vmatprep.subr.bf16.mxu0 0
    %1423 = vmatpush1.bf16.msra.mxu0 %v1267
    %1424 = vmatprep.subr.bf16.mxu0 0
    %1425 = vmatpush1.bf16.msra.mxu0 %v1268
    %1426 = vmatprep.subr.bf16.mxu0 0
    %1427 = vmatpush1.bf16.msra.mxu0 %v1269
    %1428 = vmatprep.subr.bf16.mxu0 0
    %1429 = vmatpush1.bf16.msra.mxu0 %v1270
    %1430 = vmatprep.subr.bf16.mxu0 0
    %1431 = vmatpush1.bf16.msra.mxu0 %v1271
    %1432 = vmatprep.subr.bf16.mxu0 0
    %1433 = vmatpush1.bf16.msra.mxu0 %v1272
    %1434 = vmatprep.subr.bf16.mxu0 0
    %1435 = vmatpush1.bf16.msra.mxu0 %v1273
    %1436 = vmatprep.mubr.bf16.mxu0 %v930
    %1437 = vmatmul.mubr.bf16.gmra.mrb[0].mxu0 %v929
    %v1438 = vpop.f32.mrb[0].mxu0
    %v1439 = vadd.f32 %v1398, %v1438
    %v1440 = vpop.f32.mrb[0].mxu0
    %v1441 = vpop.f32.mrb[0].mxu0
    %v1442 = vadd.f32 %v1401, %v1441
    %v1443 = vpop.f32.mrb[0].mxu0
    %1444 = vdwg.mxu0
    %1445 = vst [vmem:[%s5] sm:$0xff] %v1439
    %1446 = vst [vmem:[%s5 + $0x8] sm:$0xff] %v1442
    // Predicated region
    $region30: #{_incnet_forward.1} parent=1 // pred_check
      _
    $region31: #{_incnet_forward.1} parent=1 // pred_check_branch
      %1448 = sbr.rel (0) target = $region33
    $region32: #{_incnet_forward.1} parent=1 // pred_region
      _
    $region33: #{_incnet_forward.1} parent=1 // pred_fallthru
      _
    // Predicated region
    $region34: #{_incnet_forward.1} parent=1 // pred_check
      _
    $region35: #{_incnet_forward.1} parent=1 // pred_check_branch
      %1450 = sbr.rel (0) target = $region37
    $region36: #{_incnet_forward.1} parent=1 // pred_region
      _
    $region37: #{_incnet_forward.1} parent=1 // pred_fallthru
      _
    // Predicated region
    $region38: #{_incnet_forward.1} parent=1 // pred_check
      _
    $region39: #{_incnet_forward.1} parent=1 // pred_check_branch
      %1452 = sbr.rel (0) target = $region41
    $region40: #{_incnet_forward.1} parent=1 // pred_region
      _
    $region41: #{_incnet_forward.1} parent=1 // pred_fallthru
      _
    // Predicated region
    $region42: #{_incnet_forward.1} parent=1 // pred_check
      _
    $region43: #{_incnet_forward.1} parent=1 // pred_check_branch
      %1454 = sbr.rel (0) target = $region45
    $region44: #{_incnet_forward.1} parent=1 // pred_region
      _
    $region45: #{_incnet_forward.1} parent=1 // pred_fallthru
      _
    %1455 = vsyncpa [#allocation3], 1
    %1456 = vsyncpa [#allocation5], 1

</llo_original>
